<compile_context>
chip_gen: v5e
topology: v5e:2x2
jax: 0.10.0
libtpu: 0.0.40
codegen_flags: <defaults>
</compile_context>

<pallas_src>
import functools

import jax
import jax.numpy as jnp
from jax import lax
from jax.experimental import pallas as pl
from jax.experimental.pallas import tpu as pltpu

_NEG = -1e30  # finite "minus infinity" for max-tracking


def _supcon_kernel(fq_ref, fk_ref, labq_ref, labk_ref, out_ref,
                   m_sc, l_sc, s_sc, c_sc, *, n, tq, tk):
    qi = pl.program_id(0)
    kj = pl.program_id(1)
    nk = pl.num_programs(1)

    # ---- per-query-block init of the running accumulators ----
    @pl.when(kj == 0)
    def _():
        m_sc[...] = jnp.full((tq, 1), _NEG, dtype=jnp.float32)
        l_sc[...] = jnp.zeros((tq, 1), jnp.float32)
        s_sc[...] = jnp.zeros((tq, 1), jnp.float32)
        c_sc[...] = jnp.zeros((tq, 1), jnp.float32)

    # ---- similarity block: bf16 MXU operands, f32 accumulation, contract on
    #      the LAST dim of both operands (no transpose).  1/T is already folded
    #      into the anchor operand, so no post-matmul scaling is needed. ----
    dot = lax.dot_general(fq_ref[...], fk_ref[...],
                          dimension_numbers=(((1,), (1,)), ((), ())),
                          preferred_element_type=jnp.float32)        # (tq, tk)

    lab_eq = labq_ref[...] == labk_ref[...]           # (tq,1)==(1,tk) -> (tq,tk)

    # ---- boundary-only masking: interior tiles take the mask-free fast path ----
    diag_overlap = jnp.logical_and(qi * tq < (kj + 1) * tk,
                                   kj * tk < (qi + 1) * tq)
    has_pad_cols = (kj + 1) * tk > n                  # this key block runs past n
    needs_mask = jnp.logical_or(diag_overlap, has_pad_cols)

    def masked_path(dot_, lab_eq_):
        row_g = qi * tq + lax.broadcasted_iota(jnp.int32, (tq, tk), 0)
        col_g = kj * tk + lax.broadcasted_iota(jnp.int32, (tq, tk), 1)
        exp_mask = jnp.logical_and(row_g != col_g, col_g < n)
        dot_m = jnp.where(exp_mask, dot_, _NEG)
        pos_f = jnp.logical_and(exp_mask, lab_eq_).astype(jnp.float32)
        return dot_m, pos_f

    def fast_path(dot_, lab_eq_):
        return dot_, lab_eq_.astype(jnp.float32)

    dot_m, pos_f = lax.cond(needs_mask, masked_path, fast_path, dot, lab_eq)

    # ---- online logsumexp (masked entries: exp(_NEG - m_new) underflows to 0) ----
    x_max = jnp.max(dot_m, axis=1, keepdims=True)
    m_prev = m_sc[...]
    m_new = jnp.maximum(m_prev, x_max)
    alpha = jnp.exp(m_prev - m_new)
    l_sc[...] = alpha * l_sc[...] + jnp.sum(jnp.exp(dot_m - m_new),
                                            axis=1, keepdims=True)
    m_sc[...] = m_new

    # ---- positive-pair accumulators (pos_f reused for both sums) ----
    s_sc[...] += jnp.sum(pos_f * dot, axis=1, keepdims=True)
    c_sc[...] += jnp.sum(pos_f, axis=1, keepdims=True)

    # ---- finalize after the last key block ----
    @pl.when(kj == nk - 1)
    def _():
        l = l_sc[...]
        lse = jnp.where(l > 0.0,
                        m_sc[...] + jnp.log(jnp.maximum(l, 1e-38)), 0.0)
        c = c_sc[...]
        mean_log_prob_pos = jnp.where(
            c > 0.0, (s_sc[...] - c * lse) / jnp.maximum(c, 1.0), 0.0)
        row_idx = qi * tq + lax.broadcasted_iota(jnp.int32, (tq, 1), 0)
        out_ref[...] = jnp.where(row_idx < n, -mean_log_prob_pos, 0.0)


def _round_up(x, m):
    return (x + m - 1) // m * m


def _pick_tiles(n):
    """Defaults: big query tiles (key HBM re-stream factor is N/block_q)."""
    nr = _round_up(n, 128)
    if nr <= 512:
        return nr, nr
    bq = 1024
    try:  # v7x has only 64 MiB VMEM per TensorCore -> smaller query tiles
        info = pltpu.get_tpu_info()
        if getattr(info, "vmem_capacity_bytes", 128 << 20) <= (64 << 20):
            bq = 512
    except Exception:
        pass
    return bq, 512


def _pick_vmem_limit():
    limit = 48 * 1024 * 1024
    try:
        if pltpu.get_tpu_info().vmem_capacity_bytes >= (128 << 20):
            limit = 64 * 1024 * 1024
    except Exception:
        pass
    return limit


def supcontrast_loss(features, labels, temperature, *, block_q=None, block_k=None):
    """features: (N, D) float (any dtype), labels: (N,) int -> scalar f32 loss."""
    n, d = features.shape
    dp = _round_up(d, 128)                          # lane-aligned feature dim

    bq_def, bk_def = _pick_tiles(n)
    block_q = bq_def if block_q is None else block_q
    block_k = bk_def if block_k is None else block_k
    if max(block_q, block_k) % min(block_q, block_k) != 0:
        raise ValueError("block_q / block_k must be divisor-compatible "
                         "(bounds the N padding to max(block_q, block_k)).")
    np_ = _round_up(n, max(block_q, block_k))

    inv_temp = float(1.0 / temperature)

    # ---- hoisted normalization (one memory-bound N x D pass in XLA) ----
    f = features.astype(jnp.float32)
    inv = lax.rsqrt(jnp.maximum(jnp.sum(f * f, axis=1, keepdims=True), 1e-24))
    fn = f * inv
    fq = (fn * inv_temp).astype(jnp.bfloat16)   # anchor operand: 1/T folded in
    fk = fn.astype(jnp.bfloat16)                # key operand
    if (np_ != n) or (dp != d):
        fq = jnp.pad(fq, ((0, np_ - n), (0, dp - d)))
        fk = jnp.pad(fk, ((0, np_ - n), (0, dp - d)))

    lab = labels.reshape(-1).astype(jnp.int32)
    lab_col = lab.reshape(n, 1)
    lab_row = lab.reshape(1, n)
    if np_ != n:
        lab_col = jnp.pad(lab_col, ((0, np_ - n), (0, 0)), constant_values=-1)
        lab_row = jnp.pad(lab_row, ((0, 0), (0, np_ - n)), constant_values=-1)

    kernel = functools.partial(_supcon_kernel, n=n, tq=block_q, tk=block_k)

    per_row = pl.pallas_call(
        kernel,
        out_shape=jax.ShapeDtypeStruct((np_, 1), jnp.float32),
        grid=(np_ // block_q, np_ // block_k),
        in_specs=[
            pl.BlockSpec((block_q, dp), lambda qi, kj: (qi, 0)),   # anchors (bf16)
            pl.BlockSpec((block_k, dp), lambda qi, kj: (kj, 0)),   # keys    (bf16)
            pl.BlockSpec((block_q, 1), lambda qi, kj: (qi, 0)),    # anchor labels
            pl.BlockSpec((1, block_k), lambda qi, kj: (0, kj)),    # key labels (row)
        ],
        out_specs=pl.BlockSpec((block_q, 1), lambda qi, kj: (qi, 0)),
        scratch_shapes=[
            pltpu.VMEM((block_q, 1), jnp.float32),     # running max
            pltpu.VMEM((block_q, 1), jnp.float32),     # running sum-exp
            pltpu.VMEM((block_q, 1), jnp.float32),     # sum(mask * dot)
            pltpu.VMEM((block_q, 1), jnp.float32),     # sum(mask)
        ],
        compiler_params=pltpu.CompilerParams(
            dimension_semantics=("parallel", "arbitrary"),
            vmem_limit_bytes=_pick_vmem_limit(),
        ),
    )(fq, fk, lab_col, lab_row)

    # tiny final reduction: mean over the N real anchors
    return jnp.sum(per_row) / n


def _reference_loss(features, labels, temperature, match_kernel_precision=False):
    """Pure-JAX reference mirroring the PyTorch forward.

    match_kernel_precision=True reproduces the kernel's bf16 MXU operands
    (f32 accumulation) so it can be compared at tight tolerance.
    """
    f = features.astype(jnp.float32)
    inv = lax.rsqrt(jnp.maximum(jnp.sum(f * f, axis=1, keepdims=True), 1e-24))
    fn = f * inv
    if match_kernel_precision:
        fq = (fn * (1.0 / temperature)).astype(jnp.bfloat16).astype(jnp.float32)
        fk = fn.astype(jnp.bfloat16).astype(jnp.float32)
        dot = jnp.matmul(fq, fk.T, precision=lax.Precision.HIGHEST)
    else:
        dot = jnp.matmul(fn, fn.T, precision=lax.Precision.HIGHEST) / temperature
    nrow = f.shape[0]
    logits = dot - jnp.max(dot, axis=1, keepdims=True)
    logits_mask = 1.0 - jnp.eye(nrow, dtype=jnp.float32)
    lab = labels.reshape(-1, 1)
    mask = (lab == lab.T).astype(jnp.float32) * logits_mask
    exp_logits = jnp.exp(logits) * logits_mask
    log_prob = logits - jnp.log(jnp.sum(exp_logits, axis=1, keepdims=True))
    mask_sum = jnp.sum(mask, axis=1)
    mask_sum = jnp.where(mask_sum == 0.0, 1.0, mask_sum)
    mean_log_prob_pos = jnp.sum(mask * log_prob, axis=1) / mask_sum
    return jnp.mean(-mean_log_prob_pos)


if __name__ == "__main__":
    key = jax.random.PRNGKey(0)
    kf, kl = jax.random.split(key)

    N, D = 8, 32               # batch of anchors x feature dim (small demo)
    temperature = 0.07

    features = jax.random.normal(kf, (N, D), dtype=jnp.float32)
    labels = jax.random.randint(kl, (N,), 0, 3, dtype=jnp.int32)

    loss = supcontrast_loss(features, labels, temperature)
    loss = jax.block_until_ready(loss)

    ref_matched = _reference_loss(features, labels, temperature,
                                  match_kernel_precision=True)
    ref_f32 = _reference_loss(features, labels, temperature,
                              match_kernel_precision=False)
    # tight check vs a reference using the same bf16 MXU-operand rounding
    assert jnp.allclose(loss, ref_matched, rtol=5e-3, atol=5e-3), (loss, ref_matched)
    # loose check vs the pure-f32 PyTorch-equivalent reference
    assert jnp.allclose(loss, ref_f32, rtol=5e-2, atol=5e-2), (loss, ref_f32)

    print("KERNEL_OK")
</pallas_src>

<mosaic_0001>
module attributes {stable_mosaic.version = 11 : i64} {
  func.func @_supcon_kernel(%arg0: i32, %arg1: i32, %arg2: memref<128x128xbf16, #tpu.memory_space<vmem>>, %arg3: memref<128x128xbf16, #tpu.memory_space<vmem>>, %arg4: memref<128x1xi32, #tpu.memory_space<vmem>>, %arg5: memref<1x128xi32, #tpu.memory_space<vmem>>, %arg6: memref<128x1xf32, #tpu.memory_space<vmem>>, %arg7: memref<128x1xf32, #tpu.memory_space<vmem>>, %arg8: memref<128x1xf32, #tpu.memory_space<vmem>>, %arg9: memref<128x1xf32, #tpu.memory_space<vmem>>, %arg10: memref<128x1xf32, #tpu.memory_space<vmem>>) attributes {dimension_semantics = [#tpu.dimension_semantics<parallel>, #tpu.dimension_semantics<arbitrary>], iteration_bounds = array<i64: 1, 1>, scalar_prefetch = 0 : i64, scratch_operands = 4 : i64, tpu.core_type = #tpu.core_type<tc>, window_params = [{transform_indices = @transform_0, window_bounds = array<i64: 128, 128>}, {transform_indices = @transform_1, window_bounds = array<i64: 128, 128>}, {transform_indices = @transform_2, window_bounds = array<i64: 128, 1>}, {transform_indices = @transform_3, window_bounds = array<i64: 1, 128>}, {transform_indices = @transform_4, window_bounds = array<i64: 128, 1>}]} {
    %c0_i32 = arith.constant 0 : i32
    %0 = arith.cmpi eq, %arg1, %c0_i32 : i32
    %1 = arith.extui %0 : i1 to i32
    %c0_i32_0 = arith.constant 0 : i32
    %2 = arith.cmpi ne, %1, %c0_i32_0 : i32
    scf.if %2 {
      %cst_37 = arith.constant -1.000000e+30 : f32
      %57 = vector.broadcast %cst_37 : f32 to vector<128x1xf32>
      %c0_38 = arith.constant 0 : index
      %c0_39 = arith.constant 0 : index
      %58 = vector.load %arg7[%c0_38, %c0_39] : memref<128x1xf32, #tpu.memory_space<vmem>>, vector<128x1xf32>
      tpu.vector_store %arg7[%c0_38, %c0_39], %57 {strides = array<i32>} : memref<128x1xf32, #tpu.memory_space<vmem>>, vector<128x1xf32>,
      %cst_40 = arith.constant 0.000000e+00 : f32
      %59 = vector.broadcast %cst_40 : f32 to vector<128x1xf32>
      %c0_41 = arith.constant 0 : index
      %c0_42 = arith.constant 0 : index
      %60 = vector.load %arg8[%c0_41, %c0_42] : memref<128x1xf32, #tpu.memory_space<vmem>>, vector<128x1xf32>
      tpu.vector_store %arg8[%c0_41, %c0_42], %59 {strides = array<i32>} : memref<128x1xf32, #tpu.memory_space<vmem>>, vector<128x1xf32>,
      %cst_43 = arith.constant 0.000000e+00 : f32
      %61 = vector.broadcast %cst_43 : f32 to vector<128x1xf32>
      %c0_44 = arith.constant 0 : index
      %c0_45 = arith.constant 0 : index
      %62 = vector.load %arg9[%c0_44, %c0_45] : memref<128x1xf32, #tpu.memory_space<vmem>>, vector<128x1xf32>
      tpu.vector_store %arg9[%c0_44, %c0_45], %61 {strides = array<i32>} : memref<128x1xf32, #tpu.memory_space<vmem>>, vector<128x1xf32>,
      %cst_46 = arith.constant 0.000000e+00 : f32
      %63 = vector.broadcast %cst_46 : f32 to vector<128x1xf32>
      %c0_47 = arith.constant 0 : index
      %c0_48 = arith.constant 0 : index
      %64 = vector.load %arg10[%c0_47, %c0_48] : memref<128x1xf32, #tpu.memory_space<vmem>>, vector<128x1xf32>
      tpu.vector_store %arg10[%c0_47, %c0_48], %63 {strides = array<i32>} : memref<128x1xf32, #tpu.memory_space<vmem>>, vector<128x1xf32>,
    } else {
    }
    %c0 = arith.constant 0 : index
    %c0_1 = arith.constant 0 : index
    %3 = vector.load %arg2[%c0, %c0_1] : memref<128x128xbf16, #tpu.memory_space<vmem>>, vector<128x128xbf16>
    %c0_2 = arith.constant 0 : index
    %c0_3 = arith.constant 0 : index
    %4 = vector.load %arg3[%c0_2, %c0_3] : memref<128x128xbf16, #tpu.memory_space<vmem>>, vector<128x128xbf16>
    %cst = arith.constant dense<0.000000e+00> : vector<128x128xf32>
    %5 = tpu.matmul %3, %4, %cst {dimension_numbers = #tpu.dot_dimension_numbers<[1], [1], [0], [0], [0, 0, 1, 0], [], []>} : vector<128x128xbf16>, vector<128x128xbf16>, vector<128x128xf32> -> vector<128x128xf32>
    %c0_4 = arith.constant 0 : index
    %c0_5 = arith.constant 0 : index
    %6 = vector.load %arg4[%c0_4, %c0_5] : memref<128x1xi32, #tpu.memory_space<vmem>>, vector<128x1xi32>
    %c0_6 = arith.constant 0 : index
    %c0_7 = arith.constant 0 : index
    %7 = vector.load %arg5[%c0_6, %c0_7] : memref<1x128xi32, #tpu.memory_space<vmem>>, vector<1x128xi32>
    %8 = vector.broadcast %6 : vector<128x1xi32> to vector<128x128xi32>
    %9 = vector.broadcast %7 : vector<1x128xi32> to vector<128x128xi32>
    %10 = arith.cmpi eq, %8, %9 : vector<128x128xi32>
    %c128_i32 = arith.constant 128 : i32
    %11 = arith.muli %arg0, %c128_i32 : i32
    %c1_i32 = arith.constant 1 : i32
    %12 = arith.addi %arg1, %c1_i32 : i32
    %c128_i32_8 = arith.constant 128 : i32
    %13 = arith.muli %12, %c128_i32_8 : i32
    %14 = arith.cmpi slt, %11, %13 : i32
    %c128_i32_9 = arith.constant 128 : i32
    %15 = arith.muli %arg1, %c128_i32_9 : i32
    %c1_i32_10 = arith.constant 1 : i32
    %16 = arith.addi %arg0, %c1_i32_10 : i32
    %c128_i32_11 = arith.constant 128 : i32
    %17 = arith.muli %16, %c128_i32_11 : i32
    %18 = arith.cmpi slt, %15, %17 : i32
    %19 = arith.andi %14, %18 : i1
    %c1_i32_12 = arith.constant 1 : i32
    %20 = arith.addi %arg1, %c1_i32_12 : i32
    %c128_i32_13 = arith.constant 128 : i32
    %21 = arith.muli %20, %c128_i32_13 : i32
    %c8_i32 = arith.constant 8 : i32
    %22 = arith.cmpi sgt, %21, %c8_i32 : i32
    %23 = arith.ori %19, %22 : i1
    %24 = arith.extui %23 : i1 to i32
    %c0_i32_14 = arith.constant 0 : i32
    %25 = arith.cmpi ne, %24, %c0_i32_14 : i32
    %26:2 = scf.if %25 -> (vector<128x128xf32>, vector<128x128xf32>) {
      %c128_i32_37 = arith.constant 128 : i32
      %57 = arith.muli %arg0, %c128_i32_37 : i32
      %58 = tpu.iota {dimensions = array<i32: 0>} : vector<128x128xi32>
      %59 = vector.broadcast %57 : i32 to vector<128x128xi32>
      %60 = arith.addi %59, %58 : vector<128x128xi32>
      %c128_i32_38 = arith.constant 128 : i32
      %61 = arith.muli %arg1, %c128_i32_38 : i32
      %62 = tpu.iota {dimensions = array<i32: 1>} : vector<128x128xi32>
      %63 = vector.broadcast %61 : i32 to vector<128x128xi32>
      %64 = arith.addi %63, %62 : vector<128x128xi32>
      %65 = arith.cmpi ne, %60, %64 : vector<128x128xi32>
      %c8_i32_39 = arith.constant 8 : i32
      %66 = vector.broadcast %c8_i32_39 : i32 to vector<128x128xi32>
      %67 = arith.cmpi slt, %64, %66 : vector<128x128xi32>
      %68 = arith.andi %65, %67 : vector<128x128xi1>
      %cst_40 = arith.constant -1.000000e+30 : f32
      %69 = vector.broadcast %cst_40 : f32 to vector<128x128xf32>
      %70 = arith.select %68, %5, %69 : vector<128x128xi1>, vector<128x128xf32>
      %71 = arith.andi %68, %10 : vector<128x128xi1>
      %72 = arith.extui %71 : vector<128x128xi1> to vector<128x128xi32>
      %73 = arith.sitofp %72 : vector<128x128xi32> to vector<128x128xf32>
      scf.yield %70, %73 : vector<128x128xf32>, vector<128x128xf32>
    } else {
      %57 = arith.extui %10 : vector<128x128xi1> to vector<128x128xi32>
      %58 = arith.sitofp %57 : vector<128x128xi32> to vector<128x128xf32>
      scf.yield %5, %58 : vector<128x128xf32>, vector<128x128xf32>
    }
    %cst_15 = arith.constant dense<0xFF800000> : vector<128xf32>
    %27 = vector.multi_reduction <maximumf>, %26#0, %cst_15 [1] : vector<128x128xf32> to vector<128xf32>
    %28 = vector.shape_cast %27 : vector<128xf32> to vector<128x1xf32>
    %c0_16 = arith.constant 0 : index
    %c0_17 = arith.constant 0 : index
    %29 = vector.load %arg7[%c0_16, %c0_17] : memref<128x1xf32, #tpu.memory_space<vmem>>, vector<128x1xf32>
    %30 = arith.maximumf %29, %28 : vector<128x1xf32>
    %31 = arith.subf %29, %30 : vector<128x1xf32>
    %32 = math.exp %31 : vector<128x1xf32>
    %c0_18 = arith.constant 0 : index
    %c0_19 = arith.constant 0 : index
    %33 = vector.load %arg8[%c0_18, %c0_19] : memref<128x1xf32, #tpu.memory_space<vmem>>, vector<128x1xf32>
    %34 = arith.mulf %32, %33 : vector<128x1xf32>
    %35 = vector.broadcast %30 : vector<128x1xf32> to vector<128x128xf32>
    %36 = arith.subf %26#0, %35 : vector<128x128xf32>
    %37 = math.exp %36 : vector<128x128xf32>
    %cst_20 = arith.constant dense<0.000000e+00> : vector<128xf32>
    %38 = vector.multi_reduction <add>, %37, %cst_20 [1] : vector<128x128xf32> to vector<128xf32>
    %39 = vector.shape_cast %38 : vector<128xf32> to vector<128x1xf32>
    %40 = arith.addf %34, %39 : vector<128x1xf32>
    %c0_21 = arith.constant 0 : index
    %c0_22 = arith.constant 0 : index
    %41 = vector.load %arg8[%c0_21, %c0_22] : memref<128x1xf32, #tpu.memory_space<vmem>>, vector<128x1xf32>
    tpu.vector_store %arg8[%c0_21, %c0_22], %40 {strides = array<i32>} : memref<128x1xf32, #tpu.memory_space<vmem>>, vector<128x1xf32>,
    %c0_23 = arith.constant 0 : index
    %c0_24 = arith.constant 0 : index
    %42 = vector.load %arg7[%c0_23, %c0_24] : memref<128x1xf32, #tpu.memory_space<vmem>>, vector<128x1xf32>
    tpu.vector_store %arg7[%c0_23, %c0_24], %30 {strides = array<i32>} : memref<128x1xf32, #tpu.memory_space<vmem>>, vector<128x1xf32>,
    %c0_25 = arith.constant 0 : index
    %c0_26 = arith.constant 0 : index
    %43 = vector.load %arg9[%c0_25, %c0_26] : memref<128x1xf32, #tpu.memory_space<vmem>>, vector<128x1xf32>
    %44 = arith.mulf %26#1, %5 : vector<128x128xf32>
    %cst_27 = arith.constant dense<0.000000e+00> : vector<128xf32>
    %45 = vector.multi_reduction <add>, %44, %cst_27 [1] : vector<128x128xf32> to vector<128xf32>
    %46 = vector.shape_cast %45 : vector<128xf32> to vector<128x1xf32>
    %47 = arith.addf %43, %46 : vector<128x1xf32>
    %c0_28 = arith.constant 0 : index
    %c0_29 = arith.constant 0 : index
    %48 = vector.load %arg9[%c0_28, %c0_29] : memref<128x1xf32, #tpu.memory_space<vmem>>, vector<128x1xf32>
    tpu.vector_store %arg9[%c0_28, %c0_29], %47 {strides = array<i32>} : memref<128x1xf32, #tpu.memory_space<vmem>>, vector<128x1xf32>,
    %c0_30 = arith.constant 0 : index
    %c0_31 = arith.constant 0 : index
    %49 = vector.load %arg10[%c0_30, %c0_31] : memref<128x1xf32, #tpu.memory_space<vmem>>, vector<128x1xf32>
    %cst_32 = arith.constant dense<0.000000e+00> : vector<128xf32>
    %50 = vector.multi_reduction <add>, %26#1, %cst_32 [1] : vector<128x128xf32> to vector<128xf32>
    %51 = vector.shape_cast %50 : vector<128xf32> to vector<128x1xf32>
    %52 = arith.addf %49, %51 : vector<128x1xf32>
    %c0_33 = arith.constant 0 : index
    %c0_34 = arith.constant 0 : index
    %53 = vector.load %arg10[%c0_33, %c0_34] : memref<128x1xf32, #tpu.memory_space<vmem>>, vector<128x1xf32>
    tpu.vector_store %arg10[%c0_33, %c0_34], %52 {strides = array<i32>} : memref<128x1xf32, #tpu.memory_space<vmem>>, vector<128x1xf32>,
    %c0_i32_35 = arith.constant 0 : i32
    %54 = arith.cmpi eq, %arg1, %c0_i32_35 : i32
    %55 = arith.extui %54 : i1 to i32
    %c0_i32_36 = arith.constant 0 : i32
    %56 = arith.cmpi ne, %55, %c0_i32_36 : i32
    scf.if %56 {
      %c0_37 = arith.constant 0 : index
      %c0_38 = arith.constant 0 : index
      %57 = vector.load %arg8[%c0_37, %c0_38] : memref<128x1xf32, #tpu.memory_space<vmem>>, vector<128x1xf32>
      %cst_39 = arith.constant 0.000000e+00 : f32
      %58 = vector.broadcast %cst_39 : f32 to vector<128x1xf32>
      %59 = arith.cmpf ogt, %57, %58 : vector<128x1xf32>
      %c0_40 = arith.constant 0 : index
      %c0_41 = arith.constant 0 : index
      %60 = vector.load %arg7[%c0_40, %c0_41] : memref<128x1xf32, #tpu.memory_space<vmem>>, vector<128x1xf32>
      %cst_42 = arith.constant 9.99999935E-39 : f32
      %61 = vector.broadcast %cst_42 : f32 to vector<128x1xf32>
      %62 = arith.maximumf %57, %61 : vector<128x1xf32>
      %63 = math.log %62 : vector<128x1xf32>
      %64 = arith.addf %60, %63 : vector<128x1xf32>
      %cst_43 = arith.constant 0.000000e+00 : f32
      %65 = vector.broadcast %cst_43 : f32 to vector<128x1xf32>
      %66 = arith.select %59, %64, %65 : vector<128x1xi1>, vector<128x1xf32>
      %c0_44 = arith.constant 0 : index
      %c0_45 = arith.constant 0 : index
      %67 = vector.load %arg10[%c0_44, %c0_45] : memref<128x1xf32, #tpu.memory_space<vmem>>, vector<128x1xf32>
      %cst_46 = arith.constant 0.000000e+00 : f32
      %68 = vector.broadcast %cst_46 : f32 to vector<128x1xf32>
      %69 = arith.cmpf ogt, %67, %68 : vector<128x1xf32>
      %c0_47 = arith.constant 0 : index
      %c0_48 = arith.constant 0 : index
      %70 = vector.load %arg9[%c0_47, %c0_48] : memref<128x1xf32, #tpu.memory_space<vmem>>, vector<128x1xf32>
      %71 = arith.mulf %67, %66 : vector<128x1xf32>
      %72 = arith.subf %70, %71 : vector<128x1xf32>
      %cst_49 = arith.constant 1.000000e+00 : f32
      %73 = vector.broadcast %cst_49 : f32 to vector<128x1xf32>
      %74 = arith.maximumf %67, %73 : vector<128x1xf32>
      %75 = arith.divf %72, %74 : vector<128x1xf32>
      %cst_50 = arith.constant 0.000000e+00 : f32
      %76 = vector.broadcast %cst_50 : f32 to vector<128x1xf32>
      %77 = arith.select %69, %75, %76 : vector<128x1xi1>, vector<128x1xf32>
      %c128_i32_51 = arith.constant 128 : i32
      %78 = arith.muli %arg0, %c128_i32_51 : i32
      %79 = tpu.iota {dimensions = array<i32: 0>} : vector<128x1xi32>
      %80 = vector.broadcast %78 : i32 to vector<128x1xi32>
      %81 = arith.addi %80, %79 : vector<128x1xi32>
      %c8_i32_52 = arith.constant 8 : i32
      %82 = vector.broadcast %c8_i32_52 : i32 to vector<128x1xi32>
      %83 = arith.cmpi slt, %81, %82 : vector<128x1xi32>
      %cst_53 = arith.constant 0.000000e+00 : f32
      %84 = vector.broadcast %cst_53 : f32 to vector<128x1xf32>
      %85 = arith.subf %84, %77 : vector<128x1xf32>
      %cst_54 = arith.constant 0.000000e+00 : f32
      %86 = vector.broadcast %cst_54 : f32 to vector<128x1xf32>
      %87 = arith.select %83, %85, %86 : vector<128x1xi1>, vector<128x1xf32>
      %c0_55 = arith.constant 0 : index
      %c0_56 = arith.constant 0 : index
      %88 = vector.load %arg6[%c0_55, %c0_56] : memref<128x1xf32, #tpu.memory_space<vmem>>, vector<128x1xf32>
      tpu.vector_store %arg6[%c0_55, %c0_56], %87 {strides = array<i32>} : memref<128x1xf32, #tpu.memory_space<vmem>>, vector<128x1xf32>,
    } else {
    }
    return
  }
  func.func @transform_0(%arg0: i32, %arg1: i32) -> (i32, i32) {
    %c0_i32 = arith.constant 0 : i32
    %c0_i32_0 = arith.constant 0 : i32
    return %arg0, %c0_i32 : i32, i32
  }
  func.func @transform_1(%arg0: i32, %arg1: i32) -> (i32, i32) {
    %c0_i32 = arith.constant 0 : i32
    %c0_i32_0 = arith.constant 0 : i32
    return %arg1, %c0_i32 : i32, i32
  }
  func.func @transform_2(%arg0: i32, %arg1: i32) -> (i32, i32) {
    %c0_i32 = arith.constant 0 : i32
    %c0_i32_0 = arith.constant 0 : i32
    return %arg0, %c0_i32 : i32, i32
  }
  func.func @transform_3(%arg0: i32, %arg1: i32) -> (i32, i32) {
    %c0_i32 = arith.constant 0 : i32
    %c0_i32_0 = arith.constant 0 : i32
    return %c0_i32, %arg1 : i32, i32
  }
  func.func @transform_4(%arg0: i32, %arg1: i32) -> (i32, i32) {
    %c0_i32 = arith.constant 0 : i32
    %c0_i32_0 = arith.constant 0 : i32
    return %arg0, %c0_i32 : i32, i32
  }
}

</mosaic_0001>

<llo_original>
// kernel: tpu_custom_call.1
$region0: #{tpu_custom_call.1}
  #allocation0 [shape = 'u32[]', space=smem, size = 0x4, offset = 0x4, fixed_abs, tag = 'smem constant byte address 0x4 - core index']
  #allocation1 [shape = 'u32[72,128]{1,0:T(1,128)}', space=vmem, size = 0x9000, scoped, tag = 'internal scratch']
  #allocation2 [shape = 'f32[128,1]{1,0:T(8,128)}', space=vmem, size = 0x10000, scoped, tag = 'scratch operand']
  #allocation3 [shape = 'f32[128,1]{1,0:T(8,128)}', space=vmem, size = 0x10000, scoped, tag = 'scratch operand']
  #allocation4 [shape = 'f32[128,1]{1,0:T(8,128)}', space=vmem, size = 0x10000, scoped, tag = 'scratch operand']
  #allocation5 [shape = 'f32[128,1]{1,0:T(8,128)}', space=vmem, size = 0x10000, scoped, tag = 'scratch operand']
  %s0 = inlined_call_operand.vmem [shape: bf16[128,128], index: 0, kind: input, shape index: {}]
  %s1 = inlined_call_operand.vmem [shape: bf16[128,128], index: 1, kind: input, shape index: {}]
  %s2 = inlined_call_operand.vmem [shape: s32[128,1], index: 2, kind: input, shape index: {}]
  %s3 = inlined_call_operand.vmem [shape: s32[1,128], index: 3, kind: input, shape index: {}]
  %s4 = inlined_call_operand.vmem [shape: f32[128,1], index: 4, kind: output, shape index: {}]
  %s5 = sld [smem:[#allocation0]]
  $region42: #{tpu_custom_call.1} parent=0
    _
  %s7 = ssub.s32 1, %s5
  %s8 = scalar_select 0, %s7, %s5
  // Predicated region
  $region2: #{tpu_custom_call.1} parent=0 // pred_check
    _
  $region3: #{tpu_custom_call.1} parent=0 // pred_check_branch
    %10 = sbr.rel (0) target = $region5
  $region4: #{tpu_custom_call.1} parent=0 // pred_region
    _
  $region5: #{tpu_custom_call.1} parent=0 // pred_fallthru
    _
  // Predicated region
  $region6: #{tpu_custom_call.1} parent=0 // pred_check
    _
  $region7: #{tpu_custom_call.1} parent=0 // pred_check_branch
    %12 = sbr.rel (0) target = $region9
  $region8: #{tpu_custom_call.1} parent=0 // pred_region
    _
  $region9: #{tpu_custom_call.1} parent=0 // pred_fallthru
    _
  // Predicated region
  $region10: #{tpu_custom_call.1} parent=0 // pred_check
    _
  $region11: #{tpu_custom_call.1} parent=0 // pred_check_branch
    %14 = sbr.rel (0) target = $region13
  $region12: #{tpu_custom_call.1} parent=0 // pred_region
    _
  $region13: #{tpu_custom_call.1} parent=0 // pred_fallthru
    _
  // Predicated region
  $region14: #{tpu_custom_call.1} parent=0 // pred_check
    _
  $region15: #{tpu_custom_call.1} parent=0 // pred_check_branch
    %16 = sbr.rel (0) target = $region17
  $region16: #{tpu_custom_call.1} parent=0 // pred_region
    _
  $region17: #{tpu_custom_call.1} parent=0 // pred_fallthru
    _
  %p17 = scmp.eq.s32.totalorder 0, 0
  // Predicated region
  $region18: #{tpu_custom_call.1} parent=0 // pred_check
    %p18 = pneg %p17
  $region19: #{tpu_custom_call.1} parent=0 // pred_check_branch
    %20 = sbr.rel (%p18) target = $region21
  $region20: #{tpu_custom_call.1} parent=0 // pred_region
    %vm21 = vcmask 7168
    %22 = vst.msk [vmem:[#allocation2] sm:$0xff] %vm21, -1e+30
    %23 = vst.msk [vmem:[#allocation2 + $0x8] sm:$0xff] %vm21, -1e+30
    %24 = vst.msk [vmem:[#allocation2 + $0x10] sm:$0xff] %vm21, -1e+30
    %25 = vst.msk [vmem:[#allocation2 + $0x18] sm:$0xff] %vm21, -1e+30
    %26 = vst.msk [vmem:[#allocation2 + $0x20] sm:$0xff] %vm21, -1e+30
    %27 = vst.msk [vmem:[#allocation2 + $0x28] sm:$0xff] %vm21, -1e+30
    %28 = vst.msk [vmem:[#allocation2 + $0x30] sm:$0xff] %vm21, -1e+30
    %29 = vst.msk [vmem:[#allocation2 + $0x38] sm:$0xff] %vm21, -1e+30
    %30 = vst.msk [vmem:[#allocation2 + $0x40] sm:$0xff] %vm21, -1e+30
    %31 = vst.msk [vmem:[#allocation2 + $0x48] sm:$0xff] %vm21, -1e+30
    %32 = vst.msk [vmem:[#allocation2 + $0x50] sm:$0xff] %vm21, -1e+30
    %33 = vst.msk [vmem:[#allocation2 + $0x58] sm:$0xff] %vm21, -1e+30
    %34 = vst.msk [vmem:[#allocation2 + $0x60] sm:$0xff] %vm21, -1e+30
    %35 = vst.msk [vmem:[#allocation2 + $0x68] sm:$0xff] %vm21, -1e+30
    %36 = vst.msk [vmem:[#allocation2 + $0x70] sm:$0xff] %vm21, -1e+30
    %37 = vst.msk [vmem:[#allocation2 + $0x78] sm:$0xff] %vm21, -1e+30
    %38 = vst.msk [vmem:[#allocation3] sm:$0xff] %vm21, 0.0
    %39 = vst.msk [vmem:[#allocation3 + $0x8] sm:$0xff] %vm21, 0.0
    %40 = vst.msk [vmem:[#allocation3 + $0x10] sm:$0xff] %vm21, 0.0
    %41 = vst.msk [vmem:[#allocation3 + $0x18] sm:$0xff] %vm21, 0.0
    %42 = vst.msk [vmem:[#allocation3 + $0x20] sm:$0xff] %vm21, 0.0
    %43 = vst.msk [vmem:[#allocation3 + $0x28] sm:$0xff] %vm21, 0.0
    %44 = vst.msk [vmem:[#allocation3 + $0x30] sm:$0xff] %vm21, 0.0
    %45 = vst.msk [vmem:[#allocation3 + $0x38] sm:$0xff] %vm21, 0.0
    %46 = vst.msk [vmem:[#allocation3 + $0x40] sm:$0xff] %vm21, 0.0
    %47 = vst.msk [vmem:[#allocation3 + $0x48] sm:$0xff] %vm21, 0.0
    %48 = vst.msk [vmem:[#allocation3 + $0x50] sm:$0xff] %vm21, 0.0
    %49 = vst.msk [vmem:[#allocation3 + $0x58] sm:$0xff] %vm21, 0.0
    %50 = vst.msk [vmem:[#allocation3 + $0x60] sm:$0xff] %vm21, 0.0
    %51 = vst.msk [vmem:[#allocation3 + $0x68] sm:$0xff] %vm21, 0.0
    %52 = vst.msk [vmem:[#allocation3 + $0x70] sm:$0xff] %vm21, 0.0
    %53 = vst.msk [vmem:[#allocation3 + $0x78] sm:$0xff] %vm21, 0.0
    %54 = vst.msk [vmem:[#allocation4] sm:$0xff] %vm21, 0.0
    %55 = vst.msk [vmem:[#allocation4 + $0x8] sm:$0xff] %vm21, 0.0
    %56 = vst.msk [vmem:[#allocation4 + $0x10] sm:$0xff] %vm21, 0.0
    %57 = vst.msk [vmem:[#allocation4 + $0x18] sm:$0xff] %vm21, 0.0
    %58 = vst.msk [vmem:[#allocation4 + $0x20] sm:$0xff] %vm21, 0.0
    %59 = vst.msk [vmem:[#allocation4 + $0x28] sm:$0xff] %vm21, 0.0
    %60 = vst.msk [vmem:[#allocation4 + $0x30] sm:$0xff] %vm21, 0.0
    %61 = vst.msk [vmem:[#allocation4 + $0x38] sm:$0xff] %vm21, 0.0
    %62 = vst.msk [vmem:[#allocation4 + $0x40] sm:$0xff] %vm21, 0.0
    %63 = vst.msk [vmem:[#allocation4 + $0x48] sm:$0xff] %vm21, 0.0
    %64 = vst.msk [vmem:[#allocation4 + $0x50] sm:$0xff] %vm21, 0.0
    %65 = vst.msk [vmem:[#allocation4 + $0x58] sm:$0xff] %vm21, 0.0
    %66 = vst.msk [vmem:[#allocation4 + $0x60] sm:$0xff] %vm21, 0.0
    %67 = vst.msk [vmem:[#allocation4 + $0x68] sm:$0xff] %vm21, 0.0
    %68 = vst.msk [vmem:[#allocation4 + $0x70] sm:$0xff] %vm21, 0.0
    %69 = vst.msk [vmem:[#allocation4 + $0x78] sm:$0xff] %vm21, 0.0
    %70 = vst.msk [vmem:[#allocation5] sm:$0xff] %vm21, 0.0
    %71 = vst.msk [vmem:[#allocation5 + $0x8] sm:$0xff] %vm21, 0.0
    %72 = vst.msk [vmem:[#allocation5 + $0x10] sm:$0xff] %vm21, 0.0
    %73 = vst.msk [vmem:[#allocation5 + $0x18] sm:$0xff] %vm21, 0.0
    %74 = vst.msk [vmem:[#allocation5 + $0x20] sm:$0xff] %vm21, 0.0
    %75 = vst.msk [vmem:[#allocation5 + $0x28] sm:$0xff] %vm21, 0.0
    %76 = vst.msk [vmem:[#allocation5 + $0x30] sm:$0xff] %vm21, 0.0
    %77 = vst.msk [vmem:[#allocation5 + $0x38] sm:$0xff] %vm21, 0.0
    %78 = vst.msk [vmem:[#allocation5 + $0x40] sm:$0xff] %vm21, 0.0
    %79 = vst.msk [vmem:[#allocation5 + $0x48] sm:$0xff] %vm21, 0.0
    %80 = vst.msk [vmem:[#allocation5 + $0x50] sm:$0xff] %vm21, 0.0
    %81 = vst.msk [vmem:[#allocation5 + $0x58] sm:$0xff] %vm21, 0.0
    %82 = vst.msk [vmem:[#allocation5 + $0x60] sm:$0xff] %vm21, 0.0
    %83 = vst.msk [vmem:[#allocation5 + $0x68] sm:$0xff] %vm21, 0.0
    %84 = vst.msk [vmem:[#allocation5 + $0x70] sm:$0xff] %vm21, 0.0
    %85 = vst.msk [vmem:[#allocation5 + $0x78] sm:$0xff] %vm21, 0.0
  $region21: #{tpu_custom_call.1} parent=0 // pred_fallthru
    _
  %v86 = vld [vmem:[%s0] sm:$0xf]
  %v87 = vld [vmem:[%s0 + $0x4] sm:$0xf]
  %v88 = vld [vmem:[%s0 + $0x8] sm:$0xf]
  %v89 = vld [vmem:[%s0 + $0xc] sm:$0xf]
  %v90 = vld [vmem:[%s0 + $0x10] sm:$0xf]
  %v91 = vld [vmem:[%s0 + $0x14] sm:$0xf]
  %v92 = vld [vmem:[%s0 + $0x18] sm:$0xf]
  %v93 = vld [vmem:[%s0 + $0x1c] sm:$0xf]
  %v94 = vld [vmem:[%s0 + $0x20] sm:$0xf]
  %v95 = vld [vmem:[%s0 + $0x24] sm:$0xf]
  %v96 = vld [vmem:[%s0 + $0x28] sm:$0xf]
  %v97 = vld [vmem:[%s0 + $0x2c] sm:$0xf]
  %v98 = vld [vmem:[%s0 + $0x30] sm:$0xf]
  %v99 = vld [vmem:[%s0 + $0x34] sm:$0xf]
  %v100 = vld [vmem:[%s0 + $0x38] sm:$0xf]
  %v101 = vld [vmem:[%s0 + $0x3c] sm:$0xf]
  %v102 = vld [vmem:[%s1] sm:$0xf]
  %v103 = vld [vmem:[%s1 + $0x4] sm:$0xf]
  %v104 = vld [vmem:[%s1 + $0x8] sm:$0xf]
  %v105 = vld [vmem:[%s1 + $0xc] sm:$0xf]
  %v106 = vld [vmem:[%s1 + $0x10] sm:$0xf]
  %v107 = vld [vmem:[%s1 + $0x14] sm:$0xf]
  %v108 = vld [vmem:[%s1 + $0x18] sm:$0xf]
  %v109 = vld [vmem:[%s1 + $0x1c] sm:$0xf]
  %v110 = vld [vmem:[%s1 + $0x20] sm:$0xf]
  %v111 = vld [vmem:[%s1 + $0x24] sm:$0xf]
  %v112 = vld [vmem:[%s1 + $0x28] sm:$0xf]
  %v113 = vld [vmem:[%s1 + $0x2c] sm:$0xf]
  %v114 = vld [vmem:[%s1 + $0x30] sm:$0xf]
  %v115 = vld [vmem:[%s1 + $0x34] sm:$0xf]
  %v116 = vld [vmem:[%s1 + $0x38] sm:$0xf]
  %v117 = vld [vmem:[%s1 + $0x3c] sm:$0xf]
  %v134 = vunpack.c.l.b16 %v86
  %v135 = vunpack.c.l.b16 %v87
  %v136 = vunpack.c.l.b16 %v88
  %v137 = vunpack.c.l.b16 %v89
  %v138 = vunpack.c.l.b16 %v90
  %v139 = vunpack.c.l.b16 %v91
  %v140 = vunpack.c.l.b16 %v92
  %v141 = vunpack.c.l.b16 %v93
  %v142 = vunpack.c.l.b16 %v94
  %v143 = vunpack.c.l.b16 %v95
  %v144 = vunpack.c.l.b16 %v96
  %v145 = vunpack.c.l.b16 %v97
  %v146 = vunpack.c.l.b16 %v98
  %v147 = vunpack.c.l.b16 %v99
  %v148 = vunpack.c.l.b16 %v100
  %v149 = vunpack.c.l.b16 %v101
  %v150 = vpack.c.b16 %v135, %v134
  %v151 = vpack.c.b16 %v137, %v136
  %v152 = vpack.c.b16 %v139, %v138
  %v153 = vpack.c.b16 %v141, %v140
  %v154 = vpack.c.b16 %v143, %v142
  %v155 = vpack.c.b16 %v145, %v144
  %v156 = vpack.c.b16 %v147, %v146
  %v157 = vpack.c.b16 %v149, %v148
  %v182 = vunpack.c.l.b16 %v102
  %v183 = vunpack.c.l.b16 %v103
  %v184 = vunpack.c.l.b16 %v104
  %v185 = vunpack.c.l.b16 %v105
  %v186 = vunpack.c.l.b16 %v106
  %v187 = vunpack.c.l.b16 %v107
  %v188 = vunpack.c.l.b16 %v108
  %v189 = vunpack.c.l.b16 %v109
  %v190 = vunpack.c.l.b16 %v110
  %v191 = vunpack.c.l.b16 %v111
  %v192 = vunpack.c.l.b16 %v112
  %v193 = vunpack.c.l.b16 %v113
  %v194 = vunpack.c.l.b16 %v114
  %v195 = vunpack.c.l.b16 %v115
  %v196 = vunpack.c.l.b16 %v116
  %v197 = vunpack.c.l.b16 %v117
  %v198 = vpack.c.b16 %v183, %v182
  %v199 = vpack.c.b16 %v185, %v184
  %v200 = vpack.c.b16 %v187, %v186
  %v201 = vpack.c.b16 %v189, %v188
  %v202 = vpack.c.b16 %v191, %v190
  %v203 = vpack.c.b16 %v193, %v192
  %v204 = vpack.c.b16 %v195, %v194
  %v205 = vpack.c.b16 %v197, %v196
  %214 = vmatpush.bf16.xpose.msra.mxu0 %v205
  %215 = vmatpush.bf16.xpose.msra.mxu0 %v204
  %216 = vmatpush.bf16.xpose.msra.mxu0 %v203
  %217 = vmatpush.bf16.xpose.msra.mxu0 %v202
  %218 = vmatpush.bf16.xpose.msra.mxu0 %v201
  %219 = vmatpush.bf16.xpose.msra.mxu0 %v200
  %220 = vmatpush.bf16.xpose.msra.mxu0 %v199
  %221 = vmatpush.bf16.xpose.msra.mxu0 %v198
  %222 = vmatmul.bf16.gmra.mxu0 %v150
  %v223 = vpop.f32.mrf.mxu0
  %v224 = vadd.f32 0.0, %v223
  %v225 = vpop.f32.mrf.mxu0
  %v226 = vadd.f32 0.0, %v225
  %227 = vmatmul.bf16.gmra.mxu0 %v151
  %v228 = vpop.f32.mrf.mxu0
  %v229 = vadd.f32 0.0, %v228
  %v230 = vpop.f32.mrf.mxu0
  %v231 = vadd.f32 0.0, %v230
  %232 = vmatmul.bf16.gmra.mxu0 %v152
  %v233 = vpop.f32.mrf.mxu0
  %v234 = vadd.f32 0.0, %v233
  %v235 = vpop.f32.mrf.mxu0
  %v236 = vadd.f32 0.0, %v235
  %237 = vmatmul.bf16.gmra.mxu0 %v153
  %v238 = vpop.f32.mrf.mxu0
  %v239 = vadd.f32 0.0, %v238
  %v240 = vpop.f32.mrf.mxu0
  %v241 = vadd.f32 0.0, %v240
  %242 = vmatmul.bf16.gmra.mxu0 %v154
  %v243 = vpop.f32.mrf.mxu0
  %v244 = vadd.f32 0.0, %v243
  %v245 = vpop.f32.mrf.mxu0
  %v246 = vadd.f32 0.0, %v245
  %247 = vmatmul.bf16.gmra.mxu0 %v155
  %v248 = vpop.f32.mrf.mxu0
  %v249 = vadd.f32 0.0, %v248
  %v250 = vpop.f32.mrf.mxu0
  %v251 = vadd.f32 0.0, %v250
  %252 = vmatmul.bf16.gmra.mxu0 %v156
  %v253 = vpop.f32.mrf.mxu0
  %v254 = vadd.f32 0.0, %v253
  %v255 = vpop.f32.mrf.mxu0
  %v256 = vadd.f32 0.0, %v255
  %257 = vmatmul.bf16.gmra.mxu0 %v157
  %v258 = vpop.f32.mrf.mxu0
  %v259 = vadd.f32 0.0, %v258
  %v260 = vpop.f32.mrf.mxu0
  %v261 = vadd.f32 0.0, %v260
  %262 = vdwg.mxu0
  %v263 = vld [vmem:[%s2] sm:$0xff]
  %v264 = vld [vmem:[%s2 + $0x8] sm:$0xff]
  %v265 = vld [vmem:[%s2 + $0x10] sm:$0xff]
  %v266 = vld [vmem:[%s2 + $0x18] sm:$0xff]
  %v267 = vld [vmem:[%s2 + $0x20] sm:$0xff]
  %v268 = vld [vmem:[%s2 + $0x28] sm:$0xff]
  %v269 = vld [vmem:[%s2 + $0x30] sm:$0xff]
  %v270 = vld [vmem:[%s2 + $0x38] sm:$0xff]
  %v271 = vld [vmem:[%s2 + $0x40] sm:$0xff]
  %v272 = vld [vmem:[%s2 + $0x48] sm:$0xff]
  %v273 = vld [vmem:[%s2 + $0x50] sm:$0xff]
  %v274 = vld [vmem:[%s2 + $0x58] sm:$0xff]
  %v275 = vld [vmem:[%s2 + $0x60] sm:$0xff]
  %v276 = vld [vmem:[%s2 + $0x68] sm:$0xff]
  %v277 = vld [vmem:[%s2 + $0x70] sm:$0xff]
  %v278 = vld [vmem:[%s2 + $0x78] sm:$0xff]
  %v279 = vld [vmem:[%s3] sm:$0x1]
  %280 = vset.pattern.permute.xlu0 0
  %281 = vperm.xlu0 %280, %v263
  %v282 = vpop.permute.xlu0 %281
  %283 = vset.pattern.permute.xlu0 0
  %284 = vperm.xlu0 %283, %v264
  %v285 = vpop.permute.xlu0 %284
  %286 = vset.pattern.permute.xlu0 0
  %287 = vperm.xlu0 %286, %v265
  %v288 = vpop.permute.xlu0 %287
  %289 = vset.pattern.permute.xlu0 0
  %290 = vperm.xlu0 %289, %v266
  %v291 = vpop.permute.xlu0 %290
  %292 = vset.pattern.permute.xlu0 0
  %293 = vperm.xlu0 %292, %v267
  %v294 = vpop.permute.xlu0 %293
  %295 = vset.pattern.permute.xlu0 0
  %296 = vperm.xlu0 %295, %v268
  %v297 = vpop.permute.xlu0 %296
  %298 = vset.pattern.permute.xlu0 0
  %299 = vperm.xlu0 %298, %v269
  %v300 = vpop.permute.xlu0 %299
  %301 = vset.pattern.permute.xlu0 0
  %302 = vperm.xlu0 %301, %v270
  %v303 = vpop.permute.xlu0 %302
  %304 = vset.pattern.permute.xlu0 0
  %305 = vperm.xlu0 %304, %v271
  %v306 = vpop.permute.xlu0 %305
  %307 = vset.pattern.permute.xlu0 0
  %308 = vperm.xlu0 %307, %v272
  %v309 = vpop.permute.xlu0 %308
  %310 = vset.pattern.permute.xlu0 0
  %311 = vperm.xlu0 %310, %v273
  %v312 = vpop.permute.xlu0 %311
  %313 = vset.pattern.permute.xlu0 0
  %314 = vperm.xlu0 %313, %v274
  %v315 = vpop.permute.xlu0 %314
  %316 = vset.pattern.permute.xlu0 0
  %317 = vperm.xlu0 %316, %v275
  %v318 = vpop.permute.xlu0 %317
  %319 = vset.pattern.permute.xlu0 0
  %320 = vperm.xlu0 %319, %v276
  %v321 = vpop.permute.xlu0 %320
  %322 = vset.pattern.permute.xlu0 0
  %323 = vperm.xlu0 %322, %v277
  %v324 = vpop.permute.xlu0 %323
  %325 = vset.pattern.permute.xlu0 0
  %326 = vperm.xlu0 %325, %v278
  %v327 = vpop.permute.xlu0 %326
  %v328 = vperm.slane %v279, 0
  %vm329 = vcmp.eq.s32.totalorder %v282, %v328
  %vm330 = vcmp.eq.s32.totalorder %v285, %v328
  %vm331 = vcmp.eq.s32.totalorder %v288, %v328
  %vm332 = vcmp.eq.s32.totalorder %v291, %v328
  %vm333 = vcmp.eq.s32.totalorder %v294, %v328
  %vm334 = vcmp.eq.s32.totalorder %v297, %v328
  %vm335 = vcmp.eq.s32.totalorder %v300, %v328
  %vm336 = vcmp.eq.s32.totalorder %v303, %v328
  %vm337 = vcmp.eq.s32.totalorder %v306, %v328
  %vm338 = vcmp.eq.s32.totalorder %v309, %v328
  %vm339 = vcmp.eq.s32.totalorder %v312, %v328
  %vm340 = vcmp.eq.s32.totalorder %v315, %v328
  %vm341 = vcmp.eq.s32.totalorder %v318, %v328
  %vm342 = vcmp.eq.s32.totalorder %v321, %v328
  %vm343 = vcmp.eq.s32.totalorder %v324, %v328
  %vm344 = vcmp.eq.s32.totalorder %v327, %v328
  %s345 = smul.u32 0, 128
  %s346 = sadd.s32 0, 1
  %s347 = smul.u32 %s346, 128
  %p348 = scmp.lt.s32.totalorder %s345, %s347
  %s349 = smul.u32 0, 128
  %s350 = sadd.s32 0, 1
  %s351 = smul.u32 %s350, 128
  %p352 = scmp.lt.s32.totalorder %s349, %s351
  %p353 = pnand %p348, %p352
  %p354 = pneg %p353
  %p355 = scmp.gt.s32.totalorder %s347, 8
  %p356 = por %p354, %p355
  // Predicated region
  $region22: #{tpu_custom_call.1} parent=0 // pred_check
    %p357 = pneg %p356
  $region23: #{tpu_custom_call.1} parent=0 // pred_check_branch
    %359 = sbr.rel (%p357) target = $region25
  $region24: #{tpu_custom_call.1} parent=0 // pred_region
    %v360 = vlaneseq
    %v361 = vshrl.u32 %v360, 7
    %v362 = vadd.s32 %v361, 8
    %v363 = vadd.s32 %v361, 16
    %v364 = vadd.s32 %v361, 24
    %v365 = vadd.s32 %v361, 32
    %v366 = vadd.s32 %v361, 40
    %v367 = vadd.s32 %v361, 48
    %v368 = vadd.s32 %v361, 56
    %v369 = vadd.s32 %v361, 64
    %v370 = vadd.s32 %v361, 72
    %v371 = vadd.s32 %v361, 80
    %v372 = vadd.s32 %v361, 88
    %v373 = vadd.s32 %v361, 96
    %v374 = vadd.s32 %v361, 104
    %v375 = vadd.s32 %v361, 112
    %v376 = vadd.s32 %v361, 120
    %v377 = vstv %s345
    %v378 = vadd.s32 %v377, %v361
    %v379 = vadd.s32 %v377, %v362
    %v380 = vadd.s32 %v377, %v363
    %v381 = vadd.s32 %v377, %v364
    %v382 = vadd.s32 %v377, %v365
    %v383 = vadd.s32 %v377, %v366
    %v384 = vadd.s32 %v377, %v367
    %v385 = vadd.s32 %v377, %v368
    %v386 = vadd.s32 %v377, %v369
    %v387 = vadd.s32 %v377, %v370
    %v388 = vadd.s32 %v377, %v371
    %v389 = vadd.s32 %v377, %v372
    %v390 = vadd.s32 %v377, %v373
    %v391 = vadd.s32 %v377, %v374
    %v392 = vadd.s32 %v377, %v375
    %v393 = vadd.s32 %v377, %v376
    %v394 = vlaneseq
    %v395 = vand.u32 %v394, 127
    %v396 = vstv %s349
    %v397 = vadd.s32 %v396, %v395
    %vm398 = vcmp.ne.s32.totalorder %v378, %v397
    %vm399 = vcmp.ne.s32.totalorder %v379, %v397
    %vm400 = vcmp.ne.s32.totalorder %v380, %v397
    %vm401 = vcmp.ne.s32.totalorder %v381, %v397
    %vm402 = vcmp.ne.s32.totalorder %v382, %v397
    %vm403 = vcmp.ne.s32.totalorder %v383, %v397
    %vm404 = vcmp.ne.s32.totalorder %v384, %v397
    %vm405 = vcmp.ne.s32.totalorder %v385, %v397
    %vm406 = vcmp.ne.s32.totalorder %v386, %v397
    %vm407 = vcmp.ne.s32.totalorder %v387, %v397
    %vm408 = vcmp.ne.s32.totalorder %v388, %v397
    %vm409 = vcmp.ne.s32.totalorder %v389, %v397
    %vm410 = vcmp.ne.s32.totalorder %v390, %v397
    %vm411 = vcmp.ne.s32.totalorder %v391, %v397
    %vm412 = vcmp.ne.s32.totalorder %v392, %v397
    %vm413 = vcmp.ne.s32.totalorder %v393, %v397
    %vm414 = vcmp.lt.s32.totalorder %v397, 8
    %vm415 = vmand %vm398, %vm414
    %vm416 = vmand %vm399, %vm414
    %vm417 = vmand %vm400, %vm414
    %vm418 = vmand %vm401, %vm414
    %vm419 = vmand %vm402, %vm414
    %vm420 = vmand %vm403, %vm414
    %vm421 = vmand %vm404, %vm414
    %vm422 = vmand %vm405, %vm414
    %vm423 = vmand %vm406, %vm414
    %vm424 = vmand %vm407, %vm414
    %vm425 = vmand %vm408, %vm414
    %vm426 = vmand %vm409, %vm414
    %vm427 = vmand %vm410, %vm414
    %vm428 = vmand %vm411, %vm414
    %vm429 = vmand %vm412, %vm414
    %vm430 = vmand %vm413, %vm414
    %v431 = vsel %vm415, %v224, -1e+30
    %v432 = vsel %vm416, %v226, -1e+30
    %v433 = vsel %vm417, %v229, -1e+30
    %v434 = vsel %vm418, %v231, -1e+30
    %v435 = vsel %vm419, %v234, -1e+30
    %v436 = vsel %vm420, %v236, -1e+30
    %v437 = vsel %vm421, %v239, -1e+30
    %v438 = vsel %vm422, %v241, -1e+30
    %v439 = vsel %vm423, %v244, -1e+30
    %v440 = vsel %vm424, %v246, -1e+30
    %v441 = vsel %vm425, %v249, -1e+30
    %v442 = vsel %vm426, %v251, -1e+30
    %v443 = vsel %vm427, %v254, -1e+30
    %v444 = vsel %vm428, %v256, -1e+30
    %v445 = vsel %vm429, %v259, -1e+30
    %v446 = vsel %vm430, %v261, -1e+30
    %vm447 = vmand %vm415, %vm329
    %vm448 = vmand %vm416, %vm330
    %vm449 = vmand %vm417, %vm331
    %vm450 = vmand %vm418, %vm332
    %vm451 = vmand %vm419, %vm333
    %vm452 = vmand %vm420, %vm334
    %vm453 = vmand %vm421, %vm335
    %vm454 = vmand %vm422, %vm336
    %vm455 = vmand %vm423, %vm337
    %vm456 = vmand %vm424, %vm338
    %vm457 = vmand %vm425, %vm339
    %vm458 = vmand %vm426, %vm340
    %vm459 = vmand %vm427, %vm341
    %vm460 = vmand %vm428, %vm342
    %vm461 = vmand %vm429, %vm343
    %vm462 = vmand %vm430, %vm344
    %v463 = vsel %vm447, 1, 0
    %v464 = vsel %vm448, 1, 0
    %v465 = vsel %vm449, 1, 0
    %v466 = vsel %vm450, 1, 0
    %v467 = vsel %vm451, 1, 0
    %v468 = vsel %vm452, 1, 0
    %v469 = vsel %vm453, 1, 0
    %v470 = vsel %vm454, 1, 0
    %v471 = vsel %vm455, 1, 0
    %v472 = vsel %vm456, 1, 0
    %v473 = vsel %vm457, 1, 0
    %v474 = vsel %vm458, 1, 0
    %v475 = vsel %vm459, 1, 0
    %v476 = vsel %vm460, 1, 0
    %v477 = vsel %vm461, 1, 0
    %v478 = vsel %vm462, 1, 0
    %v479 = vcvt.s32.f32 %v463
    %v480 = vcvt.s32.f32 %v464
    %v481 = vcvt.s32.f32 %v465
    %v482 = vcvt.s32.f32 %v466
    %v483 = vcvt.s32.f32 %v467
    %v484 = vcvt.s32.f32 %v468
    %v485 = vcvt.s32.f32 %v469
    %v486 = vcvt.s32.f32 %v470
    %v487 = vcvt.s32.f32 %v471
    %v488 = vcvt.s32.f32 %v472
    %v489 = vcvt.s32.f32 %v473
    %v490 = vcvt.s32.f32 %v474
    %v491 = vcvt.s32.f32 %v475
    %v492 = vcvt.s32.f32 %v476
    %v493 = vcvt.s32.f32 %v477
    %v494 = vcvt.s32.f32 %v478
  $region25: #{tpu_custom_call.1} parent=0 // pred_fallthru
    %v495 = vphi 0, %v431
    %v496 = vphi 0, %v432
    %v497 = vphi 0, %v433
    %v498 = vphi 0, %v434
    %v499 = vphi 0, %v435
    %v500 = vphi 0, %v436
    %v501 = vphi 0, %v437
    %v502 = vphi 0, %v438
    %v503 = vphi 0, %v439
    %v504 = vphi 0, %v440
    %v505 = vphi 0, %v441
    %v506 = vphi 0, %v442
    %v507 = vphi 0, %v443
    %v508 = vphi 0, %v444
    %v509 = vphi 0, %v445
    %v510 = vphi 0, %v446
    %v511 = vphi 0, %v479
    %v512 = vphi 0, %v480
    %v513 = vphi 0, %v481
    %v514 = vphi 0, %v482
    %v515 = vphi 0, %v483
    %v516 = vphi 0, %v484
    %v517 = vphi 0, %v485
    %v518 = vphi 0, %v486
    %v519 = vphi 0, %v487
    %v520 = vphi 0, %v488
    %v521 = vphi 0, %v489
    %v522 = vphi 0, %v490
    %v523 = vphi 0, %v491
    %v524 = vphi 0, %v492
    %v525 = vphi 0, %v493
    %v526 = vphi 0, %v494
  %p527 = pneg %p356
  // Predicated region
  $region26: #{tpu_custom_call.1} parent=0 // pred_check
    _
  $region27: #{tpu_custom_call.1} parent=0 // pred_check_branch
    %529 = sbr.rel (%p356) target = $region29
  $region28: #{tpu_custom_call.1} parent=0 // pred_region
    %v530 = vsel %vm329, 1, 0
    %v531 = vsel %vm330, 1, 0
    %v532 = vsel %vm331, 1, 0
    %v533 = vsel %vm332, 1, 0
    %v534 = vsel %vm333, 1, 0
    %v535 = vsel %vm334, 1, 0
    %v536 = vsel %vm335, 1, 0
    %v537 = vsel %vm336, 1, 0
    %v538 = vsel %vm337, 1, 0
    %v539 = vsel %vm338, 1, 0
    %v540 = vsel %vm339, 1, 0
    %v541 = vsel %vm340, 1, 0
    %v542 = vsel %vm341, 1, 0
    %v543 = vsel %vm342, 1, 0
    %v544 = vsel %vm343, 1, 0
    %v545 = vsel %vm344, 1, 0
    %v546 = vcvt.s32.f32 %v530
    %v547 = vcvt.s32.f32 %v531
    %v548 = vcvt.s32.f32 %v532
    %v549 = vcvt.s32.f32 %v533
    %v550 = vcvt.s32.f32 %v534
    %v551 = vcvt.s32.f32 %v535
    %v552 = vcvt.s32.f32 %v536
    %v553 = vcvt.s32.f32 %v537
    %v554 = vcvt.s32.f32 %v538
    %v555 = vcvt.s32.f32 %v539
    %v556 = vcvt.s32.f32 %v540
    %v557 = vcvt.s32.f32 %v541
    %v558 = vcvt.s32.f32 %v542
    %v559 = vcvt.s32.f32 %v543
    %v560 = vcvt.s32.f32 %v544
    %v561 = vcvt.s32.f32 %v545
  $region29: #{tpu_custom_call.1} parent=0 // pred_fallthru
    %v562 = vphi %v495, %v224
    %v563 = vphi %v496, %v226
    %v564 = vphi %v497, %v229
    %v565 = vphi %v498, %v231
    %v566 = vphi %v499, %v234
    %v567 = vphi %v500, %v236
    %v568 = vphi %v501, %v239
    %v569 = vphi %v502, %v241
    %v570 = vphi %v503, %v244
    %v571 = vphi %v504, %v246
    %v572 = vphi %v505, %v249
    %v573 = vphi %v506, %v251
    %v574 = vphi %v507, %v254
    %v575 = vphi %v508, %v256
    %v576 = vphi %v509, %v259
    %v577 = vphi %v510, %v261
    %v578 = vphi %v511, %v546
    %v579 = vphi %v512, %v547
    %v580 = vphi %v513, %v548
    %v581 = vphi %v514, %v549
    %v582 = vphi %v515, %v550
    %v583 = vphi %v516, %v551
    %v584 = vphi %v517, %v552
    %v585 = vphi %v518, %v553
    %v586 = vphi %v519, %v554
    %v587 = vphi %v520, %v555
    %v588 = vphi %v521, %v556
    %v589 = vphi %v522, %v557
    %v590 = vphi %v523, %v558
    %v591 = vphi %v524, %v559
    %v592 = vphi %v525, %v560
    %v593 = vphi %v526, %v561
  %594 = vmax.xlane.f32.xlu0 %v562
  %v595 = vpop.xlane.xlu0 %594
  %596 = vmax.xlane.f32.xlu0 %v563
  %v597 = vpop.xlane.xlu0 %596
  %598 = vmax.xlane.f32.xlu0 %v564
  %v599 = vpop.xlane.xlu0 %598
  %600 = vmax.xlane.f32.xlu0 %v565
  %v601 = vpop.xlane.xlu0 %600
  %602 = vmax.xlane.f32.xlu0 %v566
  %v603 = vpop.xlane.xlu0 %602
  %604 = vmax.xlane.f32.xlu0 %v567
  %v605 = vpop.xlane.xlu0 %604
  %606 = vmax.xlane.f32.xlu0 %v568
  %v607 = vpop.xlane.xlu0 %606
  %608 = vmax.xlane.f32.xlu0 %v569
  %v609 = vpop.xlane.xlu0 %608
  %610 = vmax.xlane.f32.xlu0 %v570
  %v611 = vpop.xlane.xlu0 %610
  %612 = vmax.xlane.f32.xlu0 %v571
  %v613 = vpop.xlane.xlu0 %612
  %614 = vmax.xlane.f32.xlu0 %v572
  %v615 = vpop.xlane.xlu0 %614
  %616 = vmax.xlane.f32.xlu0 %v573
  %v617 = vpop.xlane.xlu0 %616
  %618 = vmax.xlane.f32.xlu0 %v574
  %v619 = vpop.xlane.xlu0 %618
  %620 = vmax.xlane.f32.xlu0 %v575
  %v621 = vpop.xlane.xlu0 %620
  %622 = vmax.xlane.f32.xlu0 %v576
  %v623 = vpop.xlane.xlu0 %622
  %624 = vmax.xlane.f32.xlu0 %v577
  %v625 = vpop.xlane.xlu0 %624
  %v626 = vld [vmem:[#allocation2] sm:$0xff]
  %v627 = vld [vmem:[#allocation2 + $0x8] sm:$0xff]
  %v628 = vld [vmem:[#allocation2 + $0x10] sm:$0xff]
  %v629 = vld [vmem:[#allocation2 + $0x18] sm:$0xff]
  %v630 = vld [vmem:[#allocation2 + $0x20] sm:$0xff]
  %v631 = vld [vmem:[#allocation2 + $0x28] sm:$0xff]
  %v632 = vld [vmem:[#allocation2 + $0x30] sm:$0xff]
  %v633 = vld [vmem:[#allocation2 + $0x38] sm:$0xff]
  %v634 = vld [vmem:[#allocation2 + $0x40] sm:$0xff]
  %v635 = vld [vmem:[#allocation2 + $0x48] sm:$0xff]
  %v636 = vld [vmem:[#allocation2 + $0x50] sm:$0xff]
  %v637 = vld [vmem:[#allocation2 + $0x58] sm:$0xff]
  %v638 = vld [vmem:[#allocation2 + $0x60] sm:$0xff]
  %v639 = vld [vmem:[#allocation2 + $0x68] sm:$0xff]
  %v640 = vld [vmem:[#allocation2 + $0x70] sm:$0xff]
  %v641 = vld [vmem:[#allocation2 + $0x78] sm:$0xff]
  %v642 = vmax.f32 %v626, %v595
  %v643 = vmax.f32 %v627, %v597
  %v644 = vmax.f32 %v628, %v599
  %v645 = vmax.f32 %v629, %v601
  %v646 = vmax.f32 %v630, %v603
  %v647 = vmax.f32 %v631, %v605
  %v648 = vmax.f32 %v632, %v607
  %v649 = vmax.f32 %v633, %v609
  %v650 = vmax.f32 %v634, %v611
  %v651 = vmax.f32 %v635, %v613
  %v652 = vmax.f32 %v636, %v615
  %v653 = vmax.f32 %v637, %v617
  %v654 = vmax.f32 %v638, %v619
  %v655 = vmax.f32 %v639, %v621
  %v656 = vmax.f32 %v640, %v623
  %v657 = vmax.f32 %v641, %v625
  %v658 = vsub.f32 %v626, %v642
  %v659 = vsub.f32 %v627, %v643
  %v660 = vsub.f32 %v628, %v644
  %v661 = vsub.f32 %v629, %v645
  %v662 = vsub.f32 %v630, %v646
  %v663 = vsub.f32 %v631, %v647
  %v664 = vsub.f32 %v632, %v648
  %v665 = vsub.f32 %v633, %v649
  %v666 = vsub.f32 %v634, %v650
  %v667 = vsub.f32 %v635, %v651
  %v668 = vsub.f32 %v636, %v652
  %v669 = vsub.f32 %v637, %v653
  %v670 = vsub.f32 %v638, %v654
  %v671 = vsub.f32 %v639, %v655
  %v672 = vsub.f32 %v640, %v656
  %v673 = vsub.f32 %v641, %v657
  %v674 = vmul.f32 %v658, 1.442695
  %v675 = vpow.pop %v674
  %v676 = vmul.f32 %v659, 1.442695
  %v677 = vpow.pop %v676
  %v678 = vmul.f32 %v660, 1.442695
  %v679 = vpow.pop %v678
  %v680 = vmul.f32 %v661, 1.442695
  %v681 = vpow.pop %v680
  %v682 = vmul.f32 %v662, 1.442695
  %v683 = vpow.pop %v682
  %v684 = vmul.f32 %v663, 1.442695
  %v685 = vpow.pop %v684
  %v686 = vmul.f32 %v664, 1.442695
  %v687 = vpow.pop %v686
  %v688 = vmul.f32 %v665, 1.442695
  %v689 = vpow.pop %v688
  %v690 = vmul.f32 %v666, 1.442695
  %v691 = vpow.pop %v690
  %v692 = vmul.f32 %v667, 1.442695
  %v693 = vpow.pop %v692
  %v694 = vmul.f32 %v668, 1.442695
  %v695 = vpow.pop %v694
  %v696 = vmul.f32 %v669, 1.442695
  %v697 = vpow.pop %v696
  %v698 = vmul.f32 %v670, 1.442695
  %v699 = vpow.pop %v698
  %v700 = vmul.f32 %v671, 1.442695
  %v701 = vpow.pop %v700
  %v702 = vmul.f32 %v672, 1.442695
  %v703 = vpow.pop %v702
  %v704 = vmul.f32 %v673, 1.442695
  %v705 = vpow.pop %v704
  %v706 = vld [vmem:[#allocation3] sm:$0xff]
  %v707 = vld [vmem:[#allocation3 + $0x8] sm:$0xff]
  %v708 = vld [vmem:[#allocation3 + $0x10] sm:$0xff]
  %v709 = vld [vmem:[#allocation3 + $0x18] sm:$0xff]
  %v710 = vld [vmem:[#allocation3 + $0x20] sm:$0xff]
  %v711 = vld [vmem:[#allocation3 + $0x28] sm:$0xff]
  %v712 = vld [vmem:[#allocation3 + $0x30] sm:$0xff]
  %v713 = vld [vmem:[#allocation3 + $0x38] sm:$0xff]
  %v714 = vld [vmem:[#allocation3 + $0x40] sm:$0xff]
  %v715 = vld [vmem:[#allocation3 + $0x48] sm:$0xff]
  %v716 = vld [vmem:[#allocation3 + $0x50] sm:$0xff]
  %v717 = vld [vmem:[#allocation3 + $0x58] sm:$0xff]
  %v718 = vld [vmem:[#allocation3 + $0x60] sm:$0xff]
  %v719 = vld [vmem:[#allocation3 + $0x68] sm:$0xff]
  %v720 = vld [vmem:[#allocation3 + $0x70] sm:$0xff]
  %v721 = vld [vmem:[#allocation3 + $0x78] sm:$0xff]
  %v722 = vmul.f32 %v675, %v706
  %v723 = vmul.f32 %v677, %v707
  %v724 = vmul.f32 %v679, %v708
  %v725 = vmul.f32 %v681, %v709
  %v726 = vmul.f32 %v683, %v710
  %v727 = vmul.f32 %v685, %v711
  %v728 = vmul.f32 %v687, %v712
  %v729 = vmul.f32 %v689, %v713
  %v730 = vmul.f32 %v691, %v714
  %v731 = vmul.f32 %v693, %v715
  %v732 = vmul.f32 %v695, %v716
  %v733 = vmul.f32 %v697, %v717
  %v734 = vmul.f32 %v699, %v718
  %v735 = vmul.f32 %v701, %v719
  %v736 = vmul.f32 %v703, %v720
  %v737 = vmul.f32 %v705, %v721
  %739 = vset.pattern.permute.xlu0 0
  %740 = vperm.xlu0 %739, %v642
  %v741 = vpop.permute.xlu0 %740
  %744 = vset.pattern.permute.xlu0 0
  %745 = vperm.xlu0 %744, %v643
  %v746 = vpop.permute.xlu0 %745
  %749 = vset.pattern.permute.xlu0 0
  %750 = vperm.xlu0 %749, %v644
  %v751 = vpop.permute.xlu0 %750
  %754 = vset.pattern.permute.xlu0 0
  %755 = vperm.xlu0 %754, %v645
  %v756 = vpop.permute.xlu0 %755
  %759 = vset.pattern.permute.xlu0 0
  %760 = vperm.xlu0 %759, %v646
  %v761 = vpop.permute.xlu0 %760
  %764 = vset.pattern.permute.xlu0 0
  %765 = vperm.xlu0 %764, %v647
  %v766 = vpop.permute.xlu0 %765
  %769 = vset.pattern.permute.xlu0 0
  %770 = vperm.xlu0 %769, %v648
  %v771 = vpop.permute.xlu0 %770
  %774 = vset.pattern.permute.xlu0 0
  %775 = vperm.xlu0 %774, %v649
  %v776 = vpop.permute.xlu0 %775
  %779 = vset.pattern.permute.xlu0 0
  %780 = vperm.xlu0 %779, %v650
  %v781 = vpop.permute.xlu0 %780
  %784 = vset.pattern.permute.xlu0 0
  %785 = vperm.xlu0 %784, %v651
  %v786 = vpop.permute.xlu0 %785
  %789 = vset.pattern.permute.xlu0 0
  %790 = vperm.xlu0 %789, %v652
  %v791 = vpop.permute.xlu0 %790
  %794 = vset.pattern.permute.xlu0 0
  %795 = vperm.xlu0 %794, %v653
  %v796 = vpop.permute.xlu0 %795
  %799 = vset.pattern.permute.xlu0 0
  %800 = vperm.xlu0 %799, %v654
  %v801 = vpop.permute.xlu0 %800
  %804 = vset.pattern.permute.xlu0 0
  %805 = vperm.xlu0 %804, %v655
  %v806 = vpop.permute.xlu0 %805
  %809 = vset.pattern.permute.xlu0 0
  %810 = vperm.xlu0 %809, %v656
  %v811 = vpop.permute.xlu0 %810
  %814 = vset.pattern.permute.xlu0 0
  %815 = vperm.xlu0 %814, %v657
  %v816 = vpop.permute.xlu0 %815
  %v818 = vsub.f32 %v562, %v741
  %v819 = vsub.f32 %v563, %v746
  %v820 = vsub.f32 %v564, %v751
  %v821 = vsub.f32 %v565, %v756
  %v822 = vsub.f32 %v566, %v761
  %v823 = vsub.f32 %v567, %v766
  %v824 = vsub.f32 %v568, %v771
  %v825 = vsub.f32 %v569, %v776
  %v826 = vsub.f32 %v570, %v781
  %v827 = vsub.f32 %v571, %v786
  %v828 = vsub.f32 %v572, %v791
  %v829 = vsub.f32 %v573, %v796
  %v830 = vsub.f32 %v574, %v801
  %v831 = vsub.f32 %v575, %v806
  %v832 = vsub.f32 %v576, %v811
  %v833 = vsub.f32 %v577, %v816
  %v834 = vmul.f32 %v818, 1.442695
  %v835 = vpow.pop %v834
  %v836 = vmul.f32 %v819, 1.442695
  %v837 = vpow.pop %v836
  %v838 = vmul.f32 %v820, 1.442695
  %v839 = vpow.pop %v838
  %v840 = vmul.f32 %v821, 1.442695
  %v841 = vpow.pop %v840
  %v842 = vmul.f32 %v822, 1.442695
  %v843 = vpow.pop %v842
  %v844 = vmul.f32 %v823, 1.442695
  %v845 = vpow.pop %v844
  %v846 = vmul.f32 %v824, 1.442695
  %v847 = vpow.pop %v846
  %v848 = vmul.f32 %v825, 1.442695
  %v849 = vpow.pop %v848
  %v850 = vmul.f32 %v826, 1.442695
  %v851 = vpow.pop %v850
  %v852 = vmul.f32 %v827, 1.442695
  %v853 = vpow.pop %v852
  %v854 = vmul.f32 %v828, 1.442695
  %v855 = vpow.pop %v854
  %v856 = vmul.f32 %v829, 1.442695
  %v857 = vpow.pop %v856
  %v858 = vmul.f32 %v830, 1.442695
  %v859 = vpow.pop %v858
  %v860 = vmul.f32 %v831, 1.442695
  %v861 = vpow.pop %v860
  %v862 = vmul.f32 %v832, 1.442695
  %v863 = vpow.pop %v862
  %v864 = vmul.f32 %v833, 1.442695
  %v865 = vpow.pop %v864
  %866 = vadd.xlane.f32.xlu0 %v835
  %v867 = vpop.xlane.xlu0 %866
  %868 = vadd.xlane.f32.xlu0 %v837
  %v869 = vpop.xlane.xlu0 %868
  %870 = vadd.xlane.f32.xlu0 %v839
  %v871 = vpop.xlane.xlu0 %870
  %872 = vadd.xlane.f32.xlu0 %v841
  %v873 = vpop.xlane.xlu0 %872
  %874 = vadd.xlane.f32.xlu0 %v843
  %v875 = vpop.xlane.xlu0 %874
  %876 = vadd.xlane.f32.xlu0 %v845
  %v877 = vpop.xlane.xlu0 %876
  %878 = vadd.xlane.f32.xlu0 %v847
  %v879 = vpop.xlane.xlu0 %878
  %880 = vadd.xlane.f32.xlu0 %v849
  %v881 = vpop.xlane.xlu0 %880
  %882 = vadd.xlane.f32.xlu0 %v851
  %v883 = vpop.xlane.xlu0 %882
  %884 = vadd.xlane.f32.xlu0 %v853
  %v885 = vpop.xlane.xlu0 %884
  %886 = vadd.xlane.f32.xlu0 %v855
  %v887 = vpop.xlane.xlu0 %886
  %888 = vadd.xlane.f32.xlu0 %v857
  %v889 = vpop.xlane.xlu0 %888
  %890 = vadd.xlane.f32.xlu0 %v859
  %v891 = vpop.xlane.xlu0 %890
  %892 = vadd.xlane.f32.xlu0 %v861
  %v893 = vpop.xlane.xlu0 %892
  %894 = vadd.xlane.f32.xlu0 %v863
  %v895 = vpop.xlane.xlu0 %894
  %896 = vadd.xlane.f32.xlu0 %v865
  %v897 = vpop.xlane.xlu0 %896
  %v898 = vadd.f32 %v722, %v867
  %v899 = vadd.f32 %v723, %v869
  %v900 = vadd.f32 %v724, %v871
  %v901 = vadd.f32 %v725, %v873
  %v902 = vadd.f32 %v726, %v875
  %v903 = vadd.f32 %v727, %v877
  %v904 = vadd.f32 %v728, %v879
  %v905 = vadd.f32 %v729, %v881
  %v906 = vadd.f32 %v730, %v883
  %v907 = vadd.f32 %v731, %v885
  %v908 = vadd.f32 %v732, %v887
  %v909 = vadd.f32 %v733, %v889
  %v910 = vadd.f32 %v734, %v891
  %v911 = vadd.f32 %v735, %v893
  %v912 = vadd.f32 %v736, %v895
  %v913 = vadd.f32 %v737, %v897
  %vm914 = vcmask 7168
  %915 = vst.msk [vmem:[#allocation3] sm:$0xff] %vm914, %v898
  %916 = vst.msk [vmem:[#allocation3 + $0x8] sm:$0xff] %vm914, %v899
  %917 = vst.msk [vmem:[#allocation3 + $0x10] sm:$0xff] %vm914, %v900
  %918 = vst.msk [vmem:[#allocation3 + $0x18] sm:$0xff] %vm914, %v901
  %919 = vst.msk [vmem:[#allocation3 + $0x20] sm:$0xff] %vm914, %v902
  %920 = vst.msk [vmem:[#allocation3 + $0x28] sm:$0xff] %vm914, %v903
  %921 = vst.msk [vmem:[#allocation3 + $0x30] sm:$0xff] %vm914, %v904
  %922 = vst.msk [vmem:[#allocation3 + $0x38] sm:$0xff] %vm914, %v905
  %923 = vst.msk [vmem:[#allocation3 + $0x40] sm:$0xff] %vm914, %v906
  %924 = vst.msk [vmem:[#allocation3 + $0x48] sm:$0xff] %vm914, %v907
  %925 = vst.msk [vmem:[#allocation3 + $0x50] sm:$0xff] %vm914, %v908
  %926 = vst.msk [vmem:[#allocation3 + $0x58] sm:$0xff] %vm914, %v909
  %927 = vst.msk [vmem:[#allocation3 + $0x60] sm:$0xff] %vm914, %v910
  %928 = vst.msk [vmem:[#allocation3 + $0x68] sm:$0xff] %vm914, %v911
  %929 = vst.msk [vmem:[#allocation3 + $0x70] sm:$0xff] %vm914, %v912
  %930 = vst.msk [vmem:[#allocation3 + $0x78] sm:$0xff] %vm914, %v913
  %931 = vst.msk [vmem:[#allocation2] sm:$0xff] %vm914, %v642
  %932 = vst.msk [vmem:[#allocation2 + $0x8] sm:$0xff] %vm914, %v643
  %933 = vst.msk [vmem:[#allocation2 + $0x10] sm:$0xff] %vm914, %v644
  %934 = vst.msk [vmem:[#allocation2 + $0x18] sm:$0xff] %vm914, %v645
  %935 = vst.msk [vmem:[#allocation2 + $0x20] sm:$0xff] %vm914, %v646
  %936 = vst.msk [vmem:[#allocation2 + $0x28] sm:$0xff] %vm914, %v647
  %937 = vst.msk [vmem:[#allocation2 + $0x30] sm:$0xff] %vm914, %v648
  %938 = vst.msk [vmem:[#allocation2 + $0x38] sm:$0xff] %vm914, %v649
  %939 = vst.msk [vmem:[#allocation2 + $0x40] sm:$0xff] %vm914, %v650
  %940 = vst.msk [vmem:[#allocation2 + $0x48] sm:$0xff] %vm914, %v651
  %941 = vst.msk [vmem:[#allocation2 + $0x50] sm:$0xff] %vm914, %v652
  %942 = vst.msk [vmem:[#allocation2 + $0x58] sm:$0xff] %vm914, %v653
  %943 = vst.msk [vmem:[#allocation2 + $0x60] sm:$0xff] %vm914, %v654
  %944 = vst.msk [vmem:[#allocation2 + $0x68] sm:$0xff] %vm914, %v655
  %945 = vst.msk [vmem:[#allocation2 + $0x70] sm:$0xff] %vm914, %v656
  %946 = vst.msk [vmem:[#allocation2 + $0x78] sm:$0xff] %vm914, %v657
  %v947 = vld [vmem:[#allocation4] sm:$0xff]
  %v948 = vld [vmem:[#allocation4 + $0x8] sm:$0xff]
  %v949 = vld [vmem:[#allocation4 + $0x10] sm:$0xff]
  %v950 = vld [vmem:[#allocation4 + $0x18] sm:$0xff]
  %v951 = vld [vmem:[#allocation4 + $0x20] sm:$0xff]
  %v952 = vld [vmem:[#allocation4 + $0x28] sm:$0xff]
  %v953 = vld [vmem:[#allocation4 + $0x30] sm:$0xff]
  %v954 = vld [vmem:[#allocation4 + $0x38] sm:$0xff]
  %v955 = vld [vmem:[#allocation4 + $0x40] sm:$0xff]
  %v956 = vld [vmem:[#allocation4 + $0x48] sm:$0xff]
  %v957 = vld [vmem:[#allocation4 + $0x50] sm:$0xff]
  %v958 = vld [vmem:[#allocation4 + $0x58] sm:$0xff]
  %v959 = vld [vmem:[#allocation4 + $0x60] sm:$0xff]
  %v960 = vld [vmem:[#allocation4 + $0x68] sm:$0xff]
  %v961 = vld [vmem:[#allocation4 + $0x70] sm:$0xff]
  %v962 = vld [vmem:[#allocation4 + $0x78] sm:$0xff]
  %v963 = vmul.f32 %v578, %v224
  %v964 = vmul.f32 %v579, %v226
  %v965 = vmul.f32 %v580, %v229
  %v966 = vmul.f32 %v581, %v231
  %v967 = vmul.f32 %v582, %v234
  %v968 = vmul.f32 %v583, %v236
  %v969 = vmul.f32 %v584, %v239
  %v970 = vmul.f32 %v585, %v241
  %v971 = vmul.f32 %v586, %v244
  %v972 = vmul.f32 %v587, %v246
  %v973 = vmul.f32 %v588, %v249
  %v974 = vmul.f32 %v589, %v251
  %v975 = vmul.f32 %v590, %v254
  %v976 = vmul.f32 %v591, %v256
  %v977 = vmul.f32 %v592, %v259
  %v978 = vmul.f32 %v593, %v261
  %979 = vadd.xlane.f32.xlu0 %v963
  %v980 = vpop.xlane.xlu0 %979
  %981 = vadd.xlane.f32.xlu0 %v964
  %v982 = vpop.xlane.xlu0 %981
  %983 = vadd.xlane.f32.xlu0 %v965
  %v984 = vpop.xlane.xlu0 %983
  %985 = vadd.xlane.f32.xlu0 %v966
  %v986 = vpop.xlane.xlu0 %985
  %987 = vadd.xlane.f32.xlu0 %v967
  %v988 = vpop.xlane.xlu0 %987
  %989 = vadd.xlane.f32.xlu0 %v968
  %v990 = vpop.xlane.xlu0 %989
  %991 = vadd.xlane.f32.xlu0 %v969
  %v992 = vpop.xlane.xlu0 %991
  %993 = vadd.xlane.f32.xlu0 %v970
  %v994 = vpop.xlane.xlu0 %993
  %995 = vadd.xlane.f32.xlu0 %v971
  %v996 = vpop.xlane.xlu0 %995
  %997 = vadd.xlane.f32.xlu0 %v972
  %v998 = vpop.xlane.xlu0 %997
  %999 = vadd.xlane.f32.xlu0 %v973
  %v1000 = vpop.xlane.xlu0 %999
  %1001 = vadd.xlane.f32.xlu0 %v974
  %v1002 = vpop.xlane.xlu0 %1001
  %1003 = vadd.xlane.f32.xlu0 %v975
  %v1004 = vpop.xlane.xlu0 %1003
  %1005 = vadd.xlane.f32.xlu0 %v976
  %v1006 = vpop.xlane.xlu0 %1005
  %1007 = vadd.xlane.f32.xlu0 %v977
  %v1008 = vpop.xlane.xlu0 %1007
  %1009 = vadd.xlane.f32.xlu0 %v978
  %v1010 = vpop.xlane.xlu0 %1009
  %v1011 = vadd.f32 %v947, %v980
  %v1012 = vadd.f32 %v948, %v982
  %v1013 = vadd.f32 %v949, %v984
  %v1014 = vadd.f32 %v950, %v986
  %v1015 = vadd.f32 %v951, %v988
  %v1016 = vadd.f32 %v952, %v990
  %v1017 = vadd.f32 %v953, %v992
  %v1018 = vadd.f32 %v954, %v994
  %v1019 = vadd.f32 %v955, %v996
  %v1020 = vadd.f32 %v956, %v998
  %v1021 = vadd.f32 %v957, %v1000
  %v1022 = vadd.f32 %v958, %v1002
  %v1023 = vadd.f32 %v959, %v1004
  %v1024 = vadd.f32 %v960, %v1006
  %v1025 = vadd.f32 %v961, %v1008
  %v1026 = vadd.f32 %v962, %v1010
  %1027 = vst.msk [vmem:[#allocation4] sm:$0xff] %vm914, %v1011
  %1028 = vst.msk [vmem:[#allocation4 + $0x8] sm:$0xff] %vm914, %v1012
  %1029 = vst.msk [vmem:[#allocation4 + $0x10] sm:$0xff] %vm914, %v1013
  %1030 = vst.msk [vmem:[#allocation4 + $0x18] sm:$0xff] %vm914, %v1014
  %1031 = vst.msk [vmem:[#allocation4 + $0x20] sm:$0xff] %vm914, %v1015
  %1032 = vst.msk [vmem:[#allocation4 + $0x28] sm:$0xff] %vm914, %v1016
  %1033 = vst.msk [vmem:[#allocation4 + $0x30] sm:$0xff] %vm914, %v1017
  %1034 = vst.msk [vmem:[#allocation4 + $0x38] sm:$0xff] %vm914, %v1018
  %1035 = vst.msk [vmem:[#allocation4 + $0x40] sm:$0xff] %vm914, %v1019
  %1036 = vst.msk [vmem:[#allocation4 + $0x48] sm:$0xff] %vm914, %v1020
  %1037 = vst.msk [vmem:[#allocation4 + $0x50] sm:$0xff] %vm914, %v1021
  %1038 = vst.msk [vmem:[#allocation4 + $0x58] sm:$0xff] %vm914, %v1022
  %1039 = vst.msk [vmem:[#allocation4 + $0x60] sm:$0xff] %vm914, %v1023
  %1040 = vst.msk [vmem:[#allocation4 + $0x68] sm:$0xff] %vm914, %v1024
  %1041 = vst.msk [vmem:[#allocation4 + $0x70] sm:$0xff] %vm914, %v1025
  %1042 = vst.msk [vmem:[#allocation4 + $0x78] sm:$0xff] %vm914, %v1026
  %v1043 = vld [vmem:[#allocation5] sm:$0xff]
  %v1044 = vld [vmem:[#allocation5 + $0x8] sm:$0xff]
  %v1045 = vld [vmem:[#allocation5 + $0x10] sm:$0xff]
  %v1046 = vld [vmem:[#allocation5 + $0x18] sm:$0xff]
  %v1047 = vld [vmem:[#allocation5 + $0x20] sm:$0xff]
  %v1048 = vld [vmem:[#allocation5 + $0x28] sm:$0xff]
  %v1049 = vld [vmem:[#allocation5 + $0x30] sm:$0xff]
  %v1050 = vld [vmem:[#allocation5 + $0x38] sm:$0xff]
  %v1051 = vld [vmem:[#allocation5 + $0x40] sm:$0xff]
  %v1052 = vld [vmem:[#allocation5 + $0x48] sm:$0xff]
  %v1053 = vld [vmem:[#allocation5 + $0x50] sm:$0xff]
  %v1054 = vld [vmem:[#allocation5 + $0x58] sm:$0xff]
  %v1055 = vld [vmem:[#allocation5 + $0x60] sm:$0xff]
  %v1056 = vld [vmem:[#allocation5 + $0x68] sm:$0xff]
  %v1057 = vld [vmem:[#allocation5 + $0x70] sm:$0xff]
  %v1058 = vld [vmem:[#allocation5 + $0x78] sm:$0xff]
  %1059 = vadd.xlane.f32.xlu0 %v578
  %v1060 = vpop.xlane.xlu0 %1059
  %1061 = vadd.xlane.f32.xlu0 %v579
  %v1062 = vpop.xlane.xlu0 %1061
  %1063 = vadd.xlane.f32.xlu0 %v580
  %v1064 = vpop.xlane.xlu0 %1063
  %1065 = vadd.xlane.f32.xlu0 %v581
  %v1066 = vpop.xlane.xlu0 %1065
  %1067 = vadd.xlane.f32.xlu0 %v582
  %v1068 = vpop.xlane.xlu0 %1067
  %1069 = vadd.xlane.f32.xlu0 %v583
  %v1070 = vpop.xlane.xlu0 %1069
  %1071 = vadd.xlane.f32.xlu0 %v584
  %v1072 = vpop.xlane.xlu0 %1071
  %1073 = vadd.xlane.f32.xlu0 %v585
  %v1074 = vpop.xlane.xlu0 %1073
  %1075 = vadd.xlane.f32.xlu0 %v586
  %v1076 = vpop.xlane.xlu0 %1075
  %1077 = vadd.xlane.f32.xlu0 %v587
  %v1078 = vpop.xlane.xlu0 %1077
  %1079 = vadd.xlane.f32.xlu0 %v588
  %v1080 = vpop.xlane.xlu0 %1079
  %1081 = vadd.xlane.f32.xlu0 %v589
  %v1082 = vpop.xlane.xlu0 %1081
  %1083 = vadd.xlane.f32.xlu0 %v590
  %v1084 = vpop.xlane.xlu0 %1083
  %1085 = vadd.xlane.f32.xlu0 %v591
  %v1086 = vpop.xlane.xlu0 %1085
  %1087 = vadd.xlane.f32.xlu0 %v592
  %v1088 = vpop.xlane.xlu0 %1087
  %1089 = vadd.xlane.f32.xlu0 %v593
  %v1090 = vpop.xlane.xlu0 %1089
  %v1091 = vadd.f32 %v1043, %v1060
  %v1092 = vadd.f32 %v1044, %v1062
  %v1093 = vadd.f32 %v1045, %v1064
  %v1094 = vadd.f32 %v1046, %v1066
  %v1095 = vadd.f32 %v1047, %v1068
  %v1096 = vadd.f32 %v1048, %v1070
  %v1097 = vadd.f32 %v1049, %v1072
  %v1098 = vadd.f32 %v1050, %v1074
  %v1099 = vadd.f32 %v1051, %v1076
  %v1100 = vadd.f32 %v1052, %v1078
  %v1101 = vadd.f32 %v1053, %v1080
  %v1102 = vadd.f32 %v1054, %v1082
  %v1103 = vadd.f32 %v1055, %v1084
  %v1104 = vadd.f32 %v1056, %v1086
  %v1105 = vadd.f32 %v1057, %v1088
  %v1106 = vadd.f32 %v1058, %v1090
  %1107 = vst.msk [vmem:[#allocation5] sm:$0xff] %vm914, %v1091
  %1108 = vst.msk [vmem:[#allocation5 + $0x8] sm:$0xff] %vm914, %v1092
  %1109 = vst.msk [vmem:[#allocation5 + $0x10] sm:$0xff] %vm914, %v1093
  %1110 = vst.msk [vmem:[#allocation5 + $0x18] sm:$0xff] %vm914, %v1094
  %1111 = vst.msk [vmem:[#allocation5 + $0x20] sm:$0xff] %vm914, %v1095
  %1112 = vst.msk [vmem:[#allocation5 + $0x28] sm:$0xff] %vm914, %v1096
  %1113 = vst.msk [vmem:[#allocation5 + $0x30] sm:$0xff] %vm914, %v1097
  %1114 = vst.msk [vmem:[#allocation5 + $0x38] sm:$0xff] %vm914, %v1098
  %1115 = vst.msk [vmem:[#allocation5 + $0x40] sm:$0xff] %vm914, %v1099
  %1116 = vst.msk [vmem:[#allocation5 + $0x48] sm:$0xff] %vm914, %v1100
  %1117 = vst.msk [vmem:[#allocation5 + $0x50] sm:$0xff] %vm914, %v1101
  %1118 = vst.msk [vmem:[#allocation5 + $0x58] sm:$0xff] %vm914, %v1102
  %1119 = vst.msk [vmem:[#allocation5 + $0x60] sm:$0xff] %vm914, %v1103
  %1120 = vst.msk [vmem:[#allocation5 + $0x68] sm:$0xff] %vm914, %v1104
  %1121 = vst.msk [vmem:[#allocation5 + $0x70] sm:$0xff] %vm914, %v1105
  %1122 = vst.msk [vmem:[#allocation5 + $0x78] sm:$0xff] %vm914, %v1106
  // Predicated region
  $region30: #{tpu_custom_call.1} parent=0 // pred_check
    %p1123 = pneg %p17
  $region31: #{tpu_custom_call.1} parent=0 // pred_check_branch
    %1125 = sbr.rel (%p1123) target = $region33
  $region32: #{tpu_custom_call.1} parent=0 // pred_region
    %v1126 = vld [vmem:[#allocation3] sm:$0xff]
    %v1127 = vld [vmem:[#allocation3 + $0x8] sm:$0xff]
    %v1128 = vld [vmem:[#allocation3 + $0x10] sm:$0xff]
    %v1129 = vld [vmem:[#allocation3 + $0x18] sm:$0xff]
    %v1130 = vld [vmem:[#allocation3 + $0x20] sm:$0xff]
    %v1131 = vld [vmem:[#allocation3 + $0x28] sm:$0xff]
    %v1132 = vld [vmem:[#allocation3 + $0x30] sm:$0xff]
    %v1133 = vld [vmem:[#allocation3 + $0x38] sm:$0xff]
    %v1134 = vld [vmem:[#allocation3 + $0x40] sm:$0xff]
    %v1135 = vld [vmem:[#allocation3 + $0x48] sm:$0xff]
    %v1136 = vld [vmem:[#allocation3 + $0x50] sm:$0xff]
    %v1137 = vld [vmem:[#allocation3 + $0x58] sm:$0xff]
    %v1138 = vld [vmem:[#allocation3 + $0x60] sm:$0xff]
    %v1139 = vld [vmem:[#allocation3 + $0x68] sm:$0xff]
    %v1140 = vld [vmem:[#allocation3 + $0x70] sm:$0xff]
    %v1141 = vld [vmem:[#allocation3 + $0x78] sm:$0xff]
    %vm1142 = vcmp.gt.f32.partialorder %v1126, 0.0
    %vm1143 = vcmp.gt.f32.partialorder %v1127, 0.0
    %vm1144 = vcmp.gt.f32.partialorder %v1128, 0.0
    %vm1145 = vcmp.gt.f32.partialorder %v1129, 0.0
    %vm1146 = vcmp.gt.f32.partialorder %v1130, 0.0
    %vm1147 = vcmp.gt.f32.partialorder %v1131, 0.0
    %vm1148 = vcmp.gt.f32.partialorder %v1132, 0.0
    %vm1149 = vcmp.gt.f32.partialorder %v1133, 0.0
    %vm1150 = vcmp.gt.f32.partialorder %v1134, 0.0
    %vm1151 = vcmp.gt.f32.partialorder %v1135, 0.0
    %vm1152 = vcmp.gt.f32.partialorder %v1136, 0.0
    %vm1153 = vcmp.gt.f32.partialorder %v1137, 0.0
    %vm1154 = vcmp.gt.f32.partialorder %v1138, 0.0
    %vm1155 = vcmp.gt.f32.partialorder %v1139, 0.0
    %vm1156 = vcmp.gt.f32.partialorder %v1140, 0.0
    %vm1157 = vcmp.gt.f32.partialorder %v1141, 0.0
    %v1158 = vld [vmem:[#allocation2] sm:$0xff]
    %v1159 = vld [vmem:[#allocation2 + $0x8] sm:$0xff]
    %v1160 = vld [vmem:[#allocation2 + $0x10] sm:$0xff]
    %v1161 = vld [vmem:[#allocation2 + $0x18] sm:$0xff]
    %v1162 = vld [vmem:[#allocation2 + $0x20] sm:$0xff]
    %v1163 = vld [vmem:[#allocation2 + $0x28] sm:$0xff]
    %v1164 = vld [vmem:[#allocation2 + $0x30] sm:$0xff]
    %v1165 = vld [vmem:[#allocation2 + $0x38] sm:$0xff]
    %v1166 = vld [vmem:[#allocation2 + $0x40] sm:$0xff]
    %v1167 = vld [vmem:[#allocation2 + $0x48] sm:$0xff]
    %v1168 = vld [vmem:[#allocation2 + $0x50] sm:$0xff]
    %v1169 = vld [vmem:[#allocation2 + $0x58] sm:$0xff]
    %v1170 = vld [vmem:[#allocation2 + $0x60] sm:$0xff]
    %v1171 = vld [vmem:[#allocation2 + $0x68] sm:$0xff]
    %v1172 = vld [vmem:[#allocation2 + $0x70] sm:$0xff]
    %v1173 = vld [vmem:[#allocation2 + $0x78] sm:$0xff]
    %v1174 = vmax.f32 %v1126, 1e-38
    %v1175 = vmax.f32 %v1127, 1e-38
    %v1176 = vmax.f32 %v1128, 1e-38
    %v1177 = vmax.f32 %v1129, 1e-38
    %v1178 = vmax.f32 %v1130, 1e-38
    %v1179 = vmax.f32 %v1131, 1e-38
    %v1180 = vmax.f32 %v1132, 1e-38
    %v1181 = vmax.f32 %v1133, 1e-38
    %v1182 = vmax.f32 %v1134, 1e-38
    %v1183 = vmax.f32 %v1135, 1e-38
    %v1184 = vmax.f32 %v1136, 1e-38
    %v1185 = vmax.f32 %v1137, 1e-38
    %v1186 = vmax.f32 %v1138, 1e-38
    %v1187 = vmax.f32 %v1139, 1e-38
    %v1188 = vmax.f32 %v1140, 1e-38
    %v1189 = vmax.f32 %v1141, 1e-38
    %v1190 = vlog2.pop %v1174
    %v1191 = vmul.f32 %v1190, 0.6931472
    %v1192 = vlog2.pop %v1175
    %v1193 = vmul.f32 %v1192, 0.6931472
    %v1194 = vlog2.pop %v1176
    %v1195 = vmul.f32 %v1194, 0.6931472
    %v1196 = vlog2.pop %v1177
    %v1197 = vmul.f32 %v1196, 0.6931472
    %v1198 = vlog2.pop %v1178
    %v1199 = vmul.f32 %v1198, 0.6931472
    %v1200 = vlog2.pop %v1179
    %v1201 = vmul.f32 %v1200, 0.6931472
    %v1202 = vlog2.pop %v1180
    %v1203 = vmul.f32 %v1202, 0.6931472
    %v1204 = vlog2.pop %v1181
    %v1205 = vmul.f32 %v1204, 0.6931472
    %v1206 = vlog2.pop %v1182
    %v1207 = vmul.f32 %v1206, 0.6931472
    %v1208 = vlog2.pop %v1183
    %v1209 = vmul.f32 %v1208, 0.6931472
    %v1210 = vlog2.pop %v1184
    %v1211 = vmul.f32 %v1210, 0.6931472
    %v1212 = vlog2.pop %v1185
    %v1213 = vmul.f32 %v1212, 0.6931472
    %v1214 = vlog2.pop %v1186
    %v1215 = vmul.f32 %v1214, 0.6931472
    %v1216 = vlog2.pop %v1187
    %v1217 = vmul.f32 %v1216, 0.6931472
    %v1218 = vlog2.pop %v1188
    %v1219 = vmul.f32 %v1218, 0.6931472
    %v1220 = vlog2.pop %v1189
    %v1221 = vmul.f32 %v1220, 0.6931472
    %v1222 = vadd.f32 %v1158, %v1191
    %v1223 = vadd.f32 %v1159, %v1193
    %v1224 = vadd.f32 %v1160, %v1195
    %v1225 = vadd.f32 %v1161, %v1197
    %v1226 = vadd.f32 %v1162, %v1199
    %v1227 = vadd.f32 %v1163, %v1201
    %v1228 = vadd.f32 %v1164, %v1203
    %v1229 = vadd.f32 %v1165, %v1205
    %v1230 = vadd.f32 %v1166, %v1207
    %v1231 = vadd.f32 %v1167, %v1209
    %v1232 = vadd.f32 %v1168, %v1211
    %v1233 = vadd.f32 %v1169, %v1213
    %v1234 = vadd.f32 %v1170, %v1215
    %v1235 = vadd.f32 %v1171, %v1217
    %v1236 = vadd.f32 %v1172, %v1219
    %v1237 = vadd.f32 %v1173, %v1221
    %v1238 = vsel %vm1142, %v1222, 0.0
    %v1239 = vsel %vm1143, %v1223, 0.0
    %v1240 = vsel %vm1144, %v1224, 0.0
    %v1241 = vsel %vm1145, %v1225, 0.0
    %v1242 = vsel %vm1146, %v1226, 0.0
    %v1243 = vsel %vm1147, %v1227, 0.0
    %v1244 = vsel %vm1148, %v1228, 0.0
    %v1245 = vsel %vm1149, %v1229, 0.0
    %v1246 = vsel %vm1150, %v1230, 0.0
    %v1247 = vsel %vm1151, %v1231, 0.0
    %v1248 = vsel %vm1152, %v1232, 0.0
    %v1249 = vsel %vm1153, %v1233, 0.0
    %v1250 = vsel %vm1154, %v1234, 0.0
    %v1251 = vsel %vm1155, %v1235, 0.0
    %v1252 = vsel %vm1156, %v1236, 0.0
    %v1253 = vsel %vm1157, %v1237, 0.0
    %v1254 = vld [vmem:[#allocation5] sm:$0xff]
    %v1255 = vld [vmem:[#allocation5 + $0x8] sm:$0xff]
    %v1256 = vld [vmem:[#allocation5 + $0x10] sm:$0xff]
    %v1257 = vld [vmem:[#allocation5 + $0x18] sm:$0xff]
    %v1258 = vld [vmem:[#allocation5 + $0x20] sm:$0xff]
    %v1259 = vld [vmem:[#allocation5 + $0x28] sm:$0xff]
    %v1260 = vld [vmem:[#allocation5 + $0x30] sm:$0xff]
    %v1261 = vld [vmem:[#allocation5 + $0x38] sm:$0xff]
    %v1262 = vld [vmem:[#allocation5 + $0x40] sm:$0xff]
    %v1263 = vld [vmem:[#allocation5 + $0x48] sm:$0xff]
    %v1264 = vld [vmem:[#allocation5 + $0x50] sm:$0xff]
    %v1265 = vld [vmem:[#allocation5 + $0x58] sm:$0xff]
    %v1266 = vld [vmem:[#allocation5 + $0x60] sm:$0xff]
    %v1267 = vld [vmem:[#allocation5 + $0x68] sm:$0xff]
    %v1268 = vld [vmem:[#allocation5 + $0x70] sm:$0xff]
    %v1269 = vld [vmem:[#allocation5 + $0x78] sm:$0xff]
    %vm1270 = vcmp.gt.f32.partialorder %v1254, 0.0
    %vm1271 = vcmp.gt.f32.partialorder %v1255, 0.0
    %vm1272 = vcmp.gt.f32.partialorder %v1256, 0.0
    %vm1273 = vcmp.gt.f32.partialorder %v1257, 0.0
    %vm1274 = vcmp.gt.f32.partialorder %v1258, 0.0
    %vm1275 = vcmp.gt.f32.partialorder %v1259, 0.0
    %vm1276 = vcmp.gt.f32.partialorder %v1260, 0.0
    %vm1277 = vcmp.gt.f32.partialorder %v1261, 0.0
    %vm1278 = vcmp.gt.f32.partialorder %v1262, 0.0
    %vm1279 = vcmp.gt.f32.partialorder %v1263, 0.0
    %vm1280 = vcmp.gt.f32.partialorder %v1264, 0.0
    %vm1281 = vcmp.gt.f32.partialorder %v1265, 0.0
    %vm1282 = vcmp.gt.f32.partialorder %v1266, 0.0
    %vm1283 = vcmp.gt.f32.partialorder %v1267, 0.0
    %vm1284 = vcmp.gt.f32.partialorder %v1268, 0.0
    %vm1285 = vcmp.gt.f32.partialorder %v1269, 0.0
    %v1286 = vld [vmem:[#allocation4] sm:$0xff]
    %v1287 = vld [vmem:[#allocation4 + $0x8] sm:$0xff]
    %v1288 = vld [vmem:[#allocation4 + $0x10] sm:$0xff]
    %v1289 = vld [vmem:[#allocation4 + $0x18] sm:$0xff]
    %v1290 = vld [vmem:[#allocation4 + $0x20] sm:$0xff]
    %v1291 = vld [vmem:[#allocation4 + $0x28] sm:$0xff]
    %v1292 = vld [vmem:[#allocation4 + $0x30] sm:$0xff]
    %v1293 = vld [vmem:[#allocation4 + $0x38] sm:$0xff]
    %v1294 = vld [vmem:[#allocation4 + $0x40] sm:$0xff]
    %v1295 = vld [vmem:[#allocation4 + $0x48] sm:$0xff]
    %v1296 = vld [vmem:[#allocation4 + $0x50] sm:$0xff]
    %v1297 = vld [vmem:[#allocation4 + $0x58] sm:$0xff]
    %v1298 = vld [vmem:[#allocation4 + $0x60] sm:$0xff]
    %v1299 = vld [vmem:[#allocation4 + $0x68] sm:$0xff]
    %v1300 = vld [vmem:[#allocation4 + $0x70] sm:$0xff]
    %v1301 = vld [vmem:[#allocation4 + $0x78] sm:$0xff]
    %v1302 = vmul.f32 %v1254, %v1238
    %v1303 = vmul.f32 %v1255, %v1239
    %v1304 = vmul.f32 %v1256, %v1240
    %v1305 = vmul.f32 %v1257, %v1241
    %v1306 = vmul.f32 %v1258, %v1242
    %v1307 = vmul.f32 %v1259, %v1243
    %v1308 = vmul.f32 %v1260, %v1244
    %v1309 = vmul.f32 %v1261, %v1245
    %v1310 = vmul.f32 %v1262, %v1246
    %v1311 = vmul.f32 %v1263, %v1247
    %v1312 = vmul.f32 %v1264, %v1248
    %v1313 = vmul.f32 %v1265, %v1249
    %v1314 = vmul.f32 %v1266, %v1250
    %v1315 = vmul.f32 %v1267, %v1251
    %v1316 = vmul.f32 %v1268, %v1252
    %v1317 = vmul.f32 %v1269, %v1253
    %v1318 = vsub.f32 %v1286, %v1302
    %v1319 = vsub.f32 %v1287, %v1303
    %v1320 = vsub.f32 %v1288, %v1304
    %v1321 = vsub.f32 %v1289, %v1305
    %v1322 = vsub.f32 %v1290, %v1306
    %v1323 = vsub.f32 %v1291, %v1307
    %v1324 = vsub.f32 %v1292, %v1308
    %v1325 = vsub.f32 %v1293, %v1309
    %v1326 = vsub.f32 %v1294, %v1310
    %v1327 = vsub.f32 %v1295, %v1311
    %v1328 = vsub.f32 %v1296, %v1312
    %v1329 = vsub.f32 %v1297, %v1313
    %v1330 = vsub.f32 %v1298, %v1314
    %v1331 = vsub.f32 %v1299, %v1315
    %v1332 = vsub.f32 %v1300, %v1316
    %v1333 = vsub.f32 %v1301, %v1317
    %v1334 = vmax.f32 %v1254, 1.0
    %v1335 = vmax.f32 %v1255, 1.0
    %v1336 = vmax.f32 %v1256, 1.0
    %v1337 = vmax.f32 %v1257, 1.0
    %v1338 = vmax.f32 %v1258, 1.0
    %v1339 = vmax.f32 %v1259, 1.0
    %v1340 = vmax.f32 %v1260, 1.0
    %v1341 = vmax.f32 %v1261, 1.0
    %v1342 = vmax.f32 %v1262, 1.0
    %v1343 = vmax.f32 %v1263, 1.0
    %v1344 = vmax.f32 %v1264, 1.0
    %v1345 = vmax.f32 %v1265, 1.0
    %v1346 = vmax.f32 %v1266, 1.0
    %v1347 = vmax.f32 %v1267, 1.0
    %v1348 = vmax.f32 %v1268, 1.0
    %v1349 = vmax.f32 %v1269, 1.0
    %v1350 = vrcp.pop %v1334
    %v1351 = vmul.f32 %v1334, %v1350
    %v1352 = vsub.f32 1.0, %v1351
    %v1353 = vmul.f32 %v1350, %v1352
    %v1354 = vadd.f32 %v1350, %v1353
    %vm1355 = vweird.f32 %v1334
    %vm1356 = vweird.f32 %v1350
    %vm1357 = vmor %vm1355, %vm1356
    %v1358 = vsel %vm1357, %v1350, %v1354
    %v1359 = vand.u32 2147483647, %v1334
    %vm1360 = vcmp.eq.f32.partialorder %v1359, 8.507059e+37
    %v1361 = vand.u32 %v1334, 2147483648
    %v1362 = vor.u32 1.1754944e-38, %v1361
    %v1363 = vsel %vm1360, %v1362, %v1358
    %v1364 = vmul.f32 %v1318, %v1363
    %v1365 = vrcp.pop %v1335
    %v1366 = vmul.f32 %v1335, %v1365
    %v1367 = vsub.f32 1.0, %v1366
    %v1368 = vmul.f32 %v1365, %v1367
    %v1369 = vadd.f32 %v1365, %v1368
    %vm1370 = vweird.f32 %v1335
    %vm1371 = vweird.f32 %v1365
    %vm1372 = vmor %vm1370, %vm1371
    %v1373 = vsel %vm1372, %v1365, %v1369
    %v1374 = vand.u32 2147483647, %v1335
    %vm1375 = vcmp.eq.f32.partialorder %v1374, 8.507059e+37
    %v1376 = vand.u32 %v1335, 2147483648
    %v1377 = vor.u32 1.1754944e-38, %v1376
    %v1378 = vsel %vm1375, %v1377, %v1373
    %v1379 = vmul.f32 %v1319, %v1378
    %v1380 = vrcp.pop %v1336
    %v1381 = vmul.f32 %v1336, %v1380
    %v1382 = vsub.f32 1.0, %v1381
    %v1383 = vmul.f32 %v1380, %v1382
    %v1384 = vadd.f32 %v1380, %v1383
    %vm1385 = vweird.f32 %v1336
    %vm1386 = vweird.f32 %v1380
    %vm1387 = vmor %vm1385, %vm1386
    %v1388 = vsel %vm1387, %v1380, %v1384
    %v1389 = vand.u32 2147483647, %v1336
    %vm1390 = vcmp.eq.f32.partialorder %v1389, 8.507059e+37
    %v1391 = vand.u32 %v1336, 2147483648
    %v1392 = vor.u32 1.1754944e-38, %v1391
    %v1393 = vsel %vm1390, %v1392, %v1388
    %v1394 = vmul.f32 %v1320, %v1393
    %v1395 = vrcp.pop %v1337
    %v1396 = vmul.f32 %v1337, %v1395
    %v1397 = vsub.f32 1.0, %v1396
    %v1398 = vmul.f32 %v1395, %v1397
    %v1399 = vadd.f32 %v1395, %v1398
    %vm1400 = vweird.f32 %v1337
    %vm1401 = vweird.f32 %v1395
    %vm1402 = vmor %vm1400, %vm1401
    %v1403 = vsel %vm1402, %v1395, %v1399
    %v1404 = vand.u32 2147483647, %v1337
    %vm1405 = vcmp.eq.f32.partialorder %v1404, 8.507059e+37
    %v1406 = vand.u32 %v1337, 2147483648
    %v1407 = vor.u32 1.1754944e-38, %v1406
    %v1408 = vsel %vm1405, %v1407, %v1403
    %v1409 = vmul.f32 %v1321, %v1408
    %v1410 = vrcp.pop %v1338
    %v1411 = vmul.f32 %v1338, %v1410
    %v1412 = vsub.f32 1.0, %v1411
    %v1413 = vmul.f32 %v1410, %v1412
    %v1414 = vadd.f32 %v1410, %v1413
    %vm1415 = vweird.f32 %v1338
    %vm1416 = vweird.f32 %v1410
    %vm1417 = vmor %vm1415, %vm1416
    %v1418 = vsel %vm1417, %v1410, %v1414
    %v1419 = vand.u32 2147483647, %v1338
    %vm1420 = vcmp.eq.f32.partialorder %v1419, 8.507059e+37
    %v1421 = vand.u32 %v1338, 2147483648
    %v1422 = vor.u32 1.1754944e-38, %v1421
    %v1423 = vsel %vm1420, %v1422, %v1418
    %v1424 = vmul.f32 %v1322, %v1423
    %v1425 = vrcp.pop %v1339
    %v1426 = vmul.f32 %v1339, %v1425
    %v1427 = vsub.f32 1.0, %v1426
    %v1428 = vmul.f32 %v1425, %v1427
    %v1429 = vadd.f32 %v1425, %v1428
    %vm1430 = vweird.f32 %v1339
    %vm1431 = vweird.f32 %v1425
    %vm1432 = vmor %vm1430, %vm1431
    %v1433 = vsel %vm1432, %v1425, %v1429
    %v1434 = vand.u32 2147483647, %v1339
    %vm1435 = vcmp.eq.f32.partialorder %v1434, 8.507059e+37
    %v1436 = vand.u32 %v1339, 2147483648
    %v1437 = vor.u32 1.1754944e-38, %v1436
    %v1438 = vsel %vm1435, %v1437, %v1433
    %v1439 = vmul.f32 %v1323, %v1438
    %v1440 = vrcp.pop %v1340
    %v1441 = vmul.f32 %v1340, %v1440
    %v1442 = vsub.f32 1.0, %v1441
    %v1443 = vmul.f32 %v1440, %v1442
    %v1444 = vadd.f32 %v1440, %v1443
    %vm1445 = vweird.f32 %v1340
    %vm1446 = vweird.f32 %v1440
    %vm1447 = vmor %vm1445, %vm1446
    %v1448 = vsel %vm1447, %v1440, %v1444
    %v1449 = vand.u32 2147483647, %v1340
    %vm1450 = vcmp.eq.f32.partialorder %v1449, 8.507059e+37
    %v1451 = vand.u32 %v1340, 2147483648
    %v1452 = vor.u32 1.1754944e-38, %v1451
    %v1453 = vsel %vm1450, %v1452, %v1448
    %v1454 = vmul.f32 %v1324, %v1453
    %v1455 = vrcp.pop %v1341
    %v1456 = vmul.f32 %v1341, %v1455
    %v1457 = vsub.f32 1.0, %v1456
    %v1458 = vmul.f32 %v1455, %v1457
    %v1459 = vadd.f32 %v1455, %v1458
    %vm1460 = vweird.f32 %v1341
    %vm1461 = vweird.f32 %v1455
    %vm1462 = vmor %vm1460, %vm1461
    %v1463 = vsel %vm1462, %v1455, %v1459
    %v1464 = vand.u32 2147483647, %v1341
    %vm1465 = vcmp.eq.f32.partialorder %v1464, 8.507059e+37
    %v1466 = vand.u32 %v1341, 2147483648
    %v1467 = vor.u32 1.1754944e-38, %v1466
    %v1468 = vsel %vm1465, %v1467, %v1463
    %v1469 = vmul.f32 %v1325, %v1468
    %v1470 = vrcp.pop %v1342
    %v1471 = vmul.f32 %v1342, %v1470
    %v1472 = vsub.f32 1.0, %v1471
    %v1473 = vmul.f32 %v1470, %v1472
    %v1474 = vadd.f32 %v1470, %v1473
    %vm1475 = vweird.f32 %v1342
    %vm1476 = vweird.f32 %v1470
    %vm1477 = vmor %vm1475, %vm1476
    %v1478 = vsel %vm1477, %v1470, %v1474
    %v1479 = vand.u32 2147483647, %v1342
    %vm1480 = vcmp.eq.f32.partialorder %v1479, 8.507059e+37
    %v1481 = vand.u32 %v1342, 2147483648
    %v1482 = vor.u32 1.1754944e-38, %v1481
    %v1483 = vsel %vm1480, %v1482, %v1478
    %v1484 = vmul.f32 %v1326, %v1483
    %v1485 = vrcp.pop %v1343
    %v1486 = vmul.f32 %v1343, %v1485
    %v1487 = vsub.f32 1.0, %v1486
    %v1488 = vmul.f32 %v1485, %v1487
    %v1489 = vadd.f32 %v1485, %v1488
    %vm1490 = vweird.f32 %v1343
    %vm1491 = vweird.f32 %v1485
    %vm1492 = vmor %vm1490, %vm1491
    %v1493 = vsel %vm1492, %v1485, %v1489
    %v1494 = vand.u32 2147483647, %v1343
    %vm1495 = vcmp.eq.f32.partialorder %v1494, 8.507059e+37
    %v1496 = vand.u32 %v1343, 2147483648
    %v1497 = vor.u32 1.1754944e-38, %v1496
    %v1498 = vsel %vm1495, %v1497, %v1493
    %v1499 = vmul.f32 %v1327, %v1498
    %v1500 = vrcp.pop %v1344
    %v1501 = vmul.f32 %v1344, %v1500
    %v1502 = vsub.f32 1.0, %v1501
    %v1503 = vmul.f32 %v1500, %v1502
    %v1504 = vadd.f32 %v1500, %v1503
    %vm1505 = vweird.f32 %v1344
    %vm1506 = vweird.f32 %v1500
    %vm1507 = vmor %vm1505, %vm1506
    %v1508 = vsel %vm1507, %v1500, %v1504
    %v1509 = vand.u32 2147483647, %v1344
    %vm1510 = vcmp.eq.f32.partialorder %v1509, 8.507059e+37
    %v1511 = vand.u32 %v1344, 2147483648
    %v1512 = vor.u32 1.1754944e-38, %v1511
    %v1513 = vsel %vm1510, %v1512, %v1508
    %v1514 = vmul.f32 %v1328, %v1513
    %v1515 = vrcp.pop %v1345
    %v1516 = vmul.f32 %v1345, %v1515
    %v1517 = vsub.f32 1.0, %v1516
    %v1518 = vmul.f32 %v1515, %v1517
    %v1519 = vadd.f32 %v1515, %v1518
    %vm1520 = vweird.f32 %v1345
    %vm1521 = vweird.f32 %v1515
    %vm1522 = vmor %vm1520, %vm1521
    %v1523 = vsel %vm1522, %v1515, %v1519
    %v1524 = vand.u32 2147483647, %v1345
    %vm1525 = vcmp.eq.f32.partialorder %v1524, 8.507059e+37
    %v1526 = vand.u32 %v1345, 2147483648
    %v1527 = vor.u32 1.1754944e-38, %v1526
    %v1528 = vsel %vm1525, %v1527, %v1523
    %v1529 = vmul.f32 %v1329, %v1528
    %v1530 = vrcp.pop %v1346
    %v1531 = vmul.f32 %v1346, %v1530
    %v1532 = vsub.f32 1.0, %v1531
    %v1533 = vmul.f32 %v1530, %v1532
    %v1534 = vadd.f32 %v1530, %v1533
    %vm1535 = vweird.f32 %v1346
    %vm1536 = vweird.f32 %v1530
    %vm1537 = vmor %vm1535, %vm1536
    %v1538 = vsel %vm1537, %v1530, %v1534
    %v1539 = vand.u32 2147483647, %v1346
    %vm1540 = vcmp.eq.f32.partialorder %v1539, 8.507059e+37
    %v1541 = vand.u32 %v1346, 2147483648
    %v1542 = vor.u32 1.1754944e-38, %v1541
    %v1543 = vsel %vm1540, %v1542, %v1538
    %v1544 = vmul.f32 %v1330, %v1543
    %v1545 = vrcp.pop %v1347
    %v1546 = vmul.f32 %v1347, %v1545
    %v1547 = vsub.f32 1.0, %v1546
    %v1548 = vmul.f32 %v1545, %v1547
    %v1549 = vadd.f32 %v1545, %v1548
    %vm1550 = vweird.f32 %v1347
    %vm1551 = vweird.f32 %v1545
    %vm1552 = vmor %vm1550, %vm1551
    %v1553 = vsel %vm1552, %v1545, %v1549
    %v1554 = vand.u32 2147483647, %v1347
    %vm1555 = vcmp.eq.f32.partialorder %v1554, 8.507059e+37
    %v1556 = vand.u32 %v1347, 2147483648
    %v1557 = vor.u32 1.1754944e-38, %v1556
    %v1558 = vsel %vm1555, %v1557, %v1553
    %v1559 = vmul.f32 %v1331, %v1558
    %v1560 = vrcp.pop %v1348
    %v1561 = vmul.f32 %v1348, %v1560
    %v1562 = vsub.f32 1.0, %v1561
    %v1563 = vmul.f32 %v1560, %v1562
    %v1564 = vadd.f32 %v1560, %v1563
    %vm1565 = vweird.f32 %v1348
    %vm1566 = vweird.f32 %v1560
    %vm1567 = vmor %vm1565, %vm1566
    %v1568 = vsel %vm1567, %v1560, %v1564
    %v1569 = vand.u32 2147483647, %v1348
    %vm1570 = vcmp.eq.f32.partialorder %v1569, 8.507059e+37
    %v1571 = vand.u32 %v1348, 2147483648
    %v1572 = vor.u32 1.1754944e-38, %v1571
    %v1573 = vsel %vm1570, %v1572, %v1568
    %v1574 = vmul.f32 %v1332, %v1573
    %v1575 = vrcp.pop %v1349
    %v1576 = vmul.f32 %v1349, %v1575
    %v1577 = vsub.f32 1.0, %v1576
    %v1578 = vmul.f32 %v1575, %v1577
    %v1579 = vadd.f32 %v1575, %v1578
    %vm1580 = vweird.f32 %v1349
    %vm1581 = vweird.f32 %v1575
    %vm1582 = vmor %vm1580, %vm1581
    %v1583 = vsel %vm1582, %v1575, %v1579
    %v1584 = vand.u32 2147483647, %v1349
    %vm1585 = vcmp.eq.f32.partialorder %v1584, 8.507059e+37
    %v1586 = vand.u32 %v1349, 2147483648
    %v1587 = vor.u32 1.1754944e-38, %v1586
    %v1588 = vsel %vm1585, %v1587, %v1583
    %v1589 = vmul.f32 %v1333, %v1588
    %v1590 = vsel %vm1270, %v1364, 0.0
    %v1591 = vsel %vm1271, %v1379, 0.0
    %v1592 = vsel %vm1272, %v1394, 0.0
    %v1593 = vsel %vm1273, %v1409, 0.0
    %v1594 = vsel %vm1274, %v1424, 0.0
    %v1595 = vsel %vm1275, %v1439, 0.0
    %v1596 = vsel %vm1276, %v1454, 0.0
    %v1597 = vsel %vm1277, %v1469, 0.0
    %v1598 = vsel %vm1278, %v1484, 0.0
    %v1599 = vsel %vm1279, %v1499, 0.0
    %v1600 = vsel %vm1280, %v1514, 0.0
    %v1601 = vsel %vm1281, %v1529, 0.0
    %v1602 = vsel %vm1282, %v1544, 0.0
    %v1603 = vsel %vm1283, %v1559, 0.0
    %v1604 = vsel %vm1284, %v1574, 0.0
    %v1605 = vsel %vm1285, %v1589, 0.0
    %v1606 = vlaneseq
    %v1607 = vshrl.u32 %v1606, 7
    %v1608 = vadd.s32 %v1607, 8
    %v1609 = vadd.s32 %v1607, 16
    %v1610 = vadd.s32 %v1607, 24
    %v1611 = vadd.s32 %v1607, 32
    %v1612 = vadd.s32 %v1607, 40
    %v1613 = vadd.s32 %v1607, 48
    %v1614 = vadd.s32 %v1607, 56
    %v1615 = vadd.s32 %v1607, 64
    %v1616 = vadd.s32 %v1607, 72
    %v1617 = vadd.s32 %v1607, 80
    %v1618 = vadd.s32 %v1607, 88
    %v1619 = vadd.s32 %v1607, 96
    %v1620 = vadd.s32 %v1607, 104
    %v1621 = vadd.s32 %v1607, 112
    %v1622 = vadd.s32 %v1607, 120
    %v1623 = vstv %s345
    %v1624 = vadd.s32 %v1623, %v1607
    %v1625 = vadd.s32 %v1623, %v1608
    %v1626 = vadd.s32 %v1623, %v1609
    %v1627 = vadd.s32 %v1623, %v1610
    %v1628 = vadd.s32 %v1623, %v1611
    %v1629 = vadd.s32 %v1623, %v1612
    %v1630 = vadd.s32 %v1623, %v1613
    %v1631 = vadd.s32 %v1623, %v1614
    %v1632 = vadd.s32 %v1623, %v1615
    %v1633 = vadd.s32 %v1623, %v1616
    %v1634 = vadd.s32 %v1623, %v1617
    %v1635 = vadd.s32 %v1623, %v1618
    %v1636 = vadd.s32 %v1623, %v1619
    %v1637 = vadd.s32 %v1623, %v1620
    %v1638 = vadd.s32 %v1623, %v1621
    %v1639 = vadd.s32 %v1623, %v1622
    %vm1640 = vcmp.lt.s32.totalorder %v1624, 8
    %vm1641 = vcmp.lt.s32.totalorder %v1625, 8
    %vm1642 = vcmp.lt.s32.totalorder %v1626, 8
    %vm1643 = vcmp.lt.s32.totalorder %v1627, 8
    %vm1644 = vcmp.lt.s32.totalorder %v1628, 8
    %vm1645 = vcmp.lt.s32.totalorder %v1629, 8
    %vm1646 = vcmp.lt.s32.totalorder %v1630, 8
    %vm1647 = vcmp.lt.s32.totalorder %v1631, 8
    %vm1648 = vcmp.lt.s32.totalorder %v1632, 8
    %vm1649 = vcmp.lt.s32.totalorder %v1633, 8
    %vm1650 = vcmp.lt.s32.totalorder %v1634, 8
    %vm1651 = vcmp.lt.s32.totalorder %v1635, 8
    %vm1652 = vcmp.lt.s32.totalorder %v1636, 8
    %vm1653 = vcmp.lt.s32.totalorder %v1637, 8
    %vm1654 = vcmp.lt.s32.totalorder %v1638, 8
    %vm1655 = vcmp.lt.s32.totalorder %v1639, 8
    %v1656 = vsub.f32 0.0, %v1590
    %v1657 = vsub.f32 0.0, %v1591
    %v1658 = vsub.f32 0.0, %v1592
    %v1659 = vsub.f32 0.0, %v1593
    %v1660 = vsub.f32 0.0, %v1594
    %v1661 = vsub.f32 0.0, %v1595
    %v1662 = vsub.f32 0.0, %v1596
    %v1663 = vsub.f32 0.0, %v1597
    %v1664 = vsub.f32 0.0, %v1598
    %v1665 = vsub.f32 0.0, %v1599
    %v1666 = vsub.f32 0.0, %v1600
    %v1667 = vsub.f32 0.0, %v1601
    %v1668 = vsub.f32 0.0, %v1602
    %v1669 = vsub.f32 0.0, %v1603
    %v1670 = vsub.f32 0.0, %v1604
    %v1671 = vsub.f32 0.0, %v1605
    %v1672 = vsel %vm1640, %v1656, 0.0
    %v1673 = vsel %vm1641, %v1657, 0.0
    %v1674 = vsel %vm1642, %v1658, 0.0
    %v1675 = vsel %vm1643, %v1659, 0.0
    %v1676 = vsel %vm1644, %v1660, 0.0
    %v1677 = vsel %vm1645, %v1661, 0.0
    %v1678 = vsel %vm1646, %v1662, 0.0
    %v1679 = vsel %vm1647, %v1663, 0.0
    %v1680 = vsel %vm1648, %v1664, 0.0
    %v1681 = vsel %vm1649, %v1665, 0.0
    %v1682 = vsel %vm1650, %v1666, 0.0
    %v1683 = vsel %vm1651, %v1667, 0.0
    %v1684 = vsel %vm1652, %v1668, 0.0
    %v1685 = vsel %vm1653, %v1669, 0.0
    %v1686 = vsel %vm1654, %v1670, 0.0
    %v1687 = vsel %vm1655, %v1671, 0.0
    %1688 = vst.msk [vmem:[%s4] sm:$0xff] %vm914, %v1672
    %1689 = vst.msk [vmem:[%s4 + $0x8] sm:$0xff] %vm914, %v1673
    %1690 = vst.msk [vmem:[%s4 + $0x10] sm:$0xff] %vm914, %v1674
    %1691 = vst.msk [vmem:[%s4 + $0x18] sm:$0xff] %vm914, %v1675
    %1692 = vst.msk [vmem:[%s4 + $0x20] sm:$0xff] %vm914, %v1676
    %1693 = vst.msk [vmem:[%s4 + $0x28] sm:$0xff] %vm914, %v1677
    %1694 = vst.msk [vmem:[%s4 + $0x30] sm:$0xff] %vm914, %v1678
    %1695 = vst.msk [vmem:[%s4 + $0x38] sm:$0xff] %vm914, %v1679
    %1696 = vst.msk [vmem:[%s4 + $0x40] sm:$0xff] %vm914, %v1680
    %1697 = vst.msk [vmem:[%s4 + $0x48] sm:$0xff] %vm914, %v1681
    %1698 = vst.msk [vmem:[%s4 + $0x50] sm:$0xff] %vm914, %v1682
    %1699 = vst.msk [vmem:[%s4 + $0x58] sm:$0xff] %vm914, %v1683
    %1700 = vst.msk [vmem:[%s4 + $0x60] sm:$0xff] %vm914, %v1684
    %1701 = vst.msk [vmem:[%s4 + $0x68] sm:$0xff] %vm914, %v1685
    %1702 = vst.msk [vmem:[%s4 + $0x70] sm:$0xff] %vm914, %v1686
    %1703 = vst.msk [vmem:[%s4 + $0x78] sm:$0xff] %vm914, %v1687
  $region33: #{tpu_custom_call.1} parent=0 // pred_fallthru
    _
  // Predicated region
  $region34: #{tpu_custom_call.1} parent=0 // pred_check
    _
  $region35: #{tpu_custom_call.1} parent=0 // pred_check_branch
    %1705 = sbr.rel (0) target = $region37
  $region36: #{tpu_custom_call.1} parent=0 // pred_region
    _
  $region37: #{tpu_custom_call.1} parent=0 // pred_fallthru
    _
  // Predicated region
  $region38: #{tpu_custom_call.1} parent=0 // pred_check
    _
  $region39: #{tpu_custom_call.1} parent=0 // pred_check_branch
    %1707 = sbr.rel (0) target = $region41
  $region40: #{tpu_custom_call.1} parent=0 // pred_region
    _
  $region41: #{tpu_custom_call.1} parent=0 // pred_fallthru
    _

</llo_original>
